<compile_context>
chip_gen: v7x
topology: tpu7x:2x2x1
jax: 0.10.0
libtpu: 0.0.40
codegen_flags: <defaults>
</compile_context>

<pallas_src>
import jax
import jax.numpy as jnp
import numpy as np
from jax.experimental import pallas as pl
from jax.experimental.pallas import tpu as pltpu

EPS = 1e-5  # PyTorch nn.LayerNorm default eps


def _layernorm(h, g, b):
    mu = jnp.mean(h, axis=-1, keepdims=True)
    var = jnp.mean(jnp.square(h - mu), axis=-1, keepdims=True)
    return (h - mu) * jax.lax.rsqrt(var + EPS) * g + b  # rsqrt -> EUP slot


# ------------------------------ fused kernel -------------------------------

def make_fused_kernel(num_layer, head_dims):
    """Kernel arg order (all refs):
       state, action,
       ws_state, ws_action, b_s1, g_s1, be_s1,
       [w1, b1, w2, b2, g, be] * num_layer,
       wh1, bh1, wh2, bh2, wsk, bsk, wme, bme,
       g1, be1, g2, be2, g3, be3,
       o1, o2, o3,
       cat_scr, pre_scr, meta_scr
    """

    def kernel(*refs):
        it = iter(refs)
        # ---- inputs ----
        state_ref = next(it)
        action_ref = next(it)
        ws_s = next(it); ws_a = next(it); b_s1 = next(it)
        g_s1 = next(it); be_s1 = next(it)
        res = [tuple(next(it) for _ in range(6)) for _ in range(num_layer)]
        wh1 = next(it); bh1 = next(it)
        wh2 = next(it); bh2 = next(it)
        wsk = next(it); bsk = next(it)
        wme = next(it); bme = next(it)
        head_ln = [(next(it), next(it)) for _ in range(3)]
        # ---- outputs ----
        out_refs = [next(it) for _ in range(3)]
        # ---- scratch ----
        cat_scr = next(it)
        pre_scr = next(it)
        meta_scr = next(it)

        state = state_ref[...]
        action = action_ref[...]
        n_s = state.shape[1]
        n_a = action.shape[1]

        # s1 = ReLU(LayerNorm(Linear(concat(state, action))))
        # concat(state, action) @ W  ==  state @ W[:n_s] + action @ W[n_s:]
        h = (jnp.dot(state, ws_s[...], preferred_element_type=jnp.float32)
             + jnp.dot(action, ws_a[...], preferred_element_type=jnp.float32)
             + b_s1[...])
        n = jnp.maximum(_layernorm(h, g_s1[...], be_s1[...]), 0.0)

        # MyModule2: stack of ResBlocks.  Concatenation done as in-kernel
        # column slice-writes into VMEM scratch (no HBM glue).
        for (w1, b1, w2, b2, g, be) in res:
            i_n = w1.shape[0]
            hh = jnp.maximum(
                jnp.dot(n, w1[...], preferred_element_type=jnp.float32) + b1[...],
                0.0)
            x2 = jnp.dot(hh, w2[...], preferred_element_type=jnp.float32) + b2[...]
            width = i_n + n_s + n_a
            cat_scr[:, 0:i_n] = n + x2
            cat_scr[:, i_n:i_n + n_s] = state
            cat_scr[:, i_n + n_s:width] = action
            n = _layernorm(cat_scr[:, 0:width], g[...], be[...])

        # Three ResBlock2 heads + meta linears, with weights stacked along N:
        #   wh1 = [W1_fp1 | W1_fp2 | W1_fp3]            (out_c, 3*2*out_c)
        #   wh2 = blockdiag(W2_fp1, W2_fp2, W2_fp3)     (3*2*out_c, n1+n2+n3)
        #   wsk = [W3_fp1 | W3_fp2 | W3_fp3]            (out_c,     n1+n2+n3)
        #   wme = [Wmeta1 | Wmeta2 | Wmeta3]            (n_a,       n1+n2+n3)
        hh = jnp.maximum(
            jnp.dot(n, wh1[...], preferred_element_type=jnp.float32) + bh1[...],
            0.0)
        s1h = jnp.dot(hh, wh2[...], preferred_element_type=jnp.float32) + bh2[...]
        s2h = jnp.dot(n, wsk[...], preferred_element_type=jnp.float32) + bsk[...]
        pre_scr[...] = s1h + s2h
        meta_scr[...] = (jnp.dot(action, wme[...],
                                 preferred_element_type=jnp.float32) + bme[...])

        off = 0
        for ni, (g, be), o_ref in zip(head_dims, head_ln, out_refs):
            seg = pre_scr[:, off:off + ni]
            o_ref[...] = (_layernorm(seg, g[...], be[...])
                          + meta_scr[:, off:off + ni])
            off += ni

    return kernel


# -------------------------- parameter initialization -----------------------

def init_linear(key, fan_in, fan_out):
    """PyTorch nn.Linear default init: U(-1/sqrt(fan_in), 1/sqrt(fan_in)).
    Weight stored as (in, out) so the kernel computes x @ W (same semantics)."""
    kw, kb = jax.random.split(key)
    bound = 1.0 / (fan_in ** 0.5)
    w = jax.random.uniform(kw, (fan_in, fan_out), jnp.float32, -bound, bound)
    b = jax.random.uniform(kb, (1, fan_out), jnp.float32, -bound, bound)
    return w, b


def init_params(key, input_num, output_num, num_layer, n_s, n_a, n_1, n_2, n_3):
    keys = iter(jax.random.split(key, 64))
    p = {}

    w, b = init_linear(next(keys), input_num, output_num)
    p["s1"] = (w, b, jnp.ones((1, output_num), jnp.float32),
               jnp.zeros((1, output_num), jnp.float32))

    p["res"] = []
    i_n = output_num
    for _ in range(num_layer):
        w1, b1 = init_linear(next(keys), i_n, i_n * 2)
        w2, b2 = init_linear(next(keys), i_n * 2, i_n)
        width = i_n + n_s + n_a
        p["res"].append((w1, b1, w2, b2,
                         jnp.ones((1, width), jnp.float32),
                         jnp.zeros((1, width), jnp.float32)))
        i_n = width
    out_c = i_n  # = output_num + num_layer * (n_s + n_a)

    def rb2(key, n_out):
        k1, k2, k3 = jax.random.split(key, 3)
        w1, b1 = init_linear(k1, out_c, out_c * 2)
        w2, b2 = init_linear(k2, out_c * 2, n_out)
        w3, b3 = init_linear(k3, out_c, n_out)
        return (w1, b1, w2, b2, w3, b3,
                jnp.ones((1, n_out), jnp.float32),
                jnp.zeros((1, n_out), jnp.float32))

    p["fp1"] = rb2(next(keys), n_1)
    p["fp2"] = rb2(next(keys), n_2)
    p["fp3"] = rb2(next(keys), n_3)
    p["meta1"] = init_linear(next(keys), n_a, n_1)
    p["meta2"] = init_linear(next(keys), n_a, n_2)
    p["meta3"] = init_linear(next(keys), n_a, n_3)
    return p, out_c


# -------------------- parameter stacking for the fused kernel ---------------

def _block_diag(mats):
    rows = sum(m.shape[0] for m in mats)
    cols = sum(m.shape[1] for m in mats)
    out = jnp.zeros((rows, cols), jnp.float32)
    r = c = 0
    for m in mats:
        out = out.at[r:r + m.shape[0], c:c + m.shape[1]].set(m)
        r += m.shape[0]
        c += m.shape[1]
    return out


def prepare_fused_params(params, n_s):
    """Flatten + stack weights for the fused kernel.  Done ONCE, outside jit."""
    flat = []
    w, b, g, be = params["s1"]
    flat += [w[:n_s], w[n_s:], b, g, be]          # split rows: state / action part
    for lp in params["res"]:
        flat += list(lp)

    fps = [params["fp1"], params["fp2"], params["fp3"]]
    metas = [params["meta1"], params["meta2"], params["meta3"]]
    w1s = [fp[0] for fp in fps]; b1s = [fp[1] for fp in fps]
    w2s = [fp[2] for fp in fps]; b2s = [fp[3] for fp in fps]
    w3s = [fp[4] for fp in fps]; b3s = [fp[5] for fp in fps]
    flat += [jnp.concatenate(w1s, axis=1), jnp.concatenate(b1s, axis=1),
             _block_diag(w2s),             jnp.concatenate(b2s, axis=1),
             jnp.concatenate(w3s, axis=1), jnp.concatenate(b3s, axis=1),
             jnp.concatenate([m[0] for m in metas], axis=1),
             jnp.concatenate([m[1] for m in metas], axis=1)]
    for fp in fps:
        flat += [fp[6], fp[7]]                    # per-head LayerNorm gamma/beta
    head_dims = tuple(w2.shape[1] for w2 in w2s)
    return tuple(flat), head_dims


# ------------------------------- forward pass ------------------------------

def _pick_batch_tile(B):
    # Single program for small batches; shard the batch over the grid (and
    # v7x's two TensorCores via "parallel") for large divisible batches.
    if B > 128 and B % 128 == 0:
        return 128
    return B


def make_dqnnet_forward(num_layer, head_dims, out_c):
    kernel = make_fused_kernel(num_layer, head_dims)
    n_total = sum(head_dims)

    @jax.jit
    def forward(state, action, flat_params):
        B, n_s = state.shape
        n_a = action.shape[1]
        tb = _pick_batch_tile(B)
        grid = (B // tb,)

        def data_spec(feat):
            return pl.BlockSpec((tb, feat), lambda i: (i, 0))

        def weight_spec(p):
            shp = p.shape
            return pl.BlockSpec(shp, lambda i, _s=shp: (0,) * len(_s))

        in_specs = [data_spec(n_s), data_spec(n_a)]
        in_specs += [weight_spec(p) for p in flat_params]
        out_specs = tuple(data_spec(ni) for ni in head_dims)
        out_shape = tuple(jax.ShapeDtypeStruct((B, ni), jnp.float32)
                          for ni in head_dims)
        scratch_shapes = [
            pltpu.VMEM((tb, out_c), jnp.float32),     # ResBlock concat buffer
            pltpu.VMEM((tb, n_total), jnp.float32),   # stacked head pre-LN
            pltpu.VMEM((tb, n_total), jnp.float32),   # stacked meta output
        ]
        return pl.pallas_call(
            kernel,
            out_shape=out_shape,
            grid=grid,
            in_specs=in_specs,
            out_specs=out_specs,
            scratch_shapes=scratch_shapes,
            compiler_params=pltpu.CompilerParams(
                dimension_semantics=("parallel",)),
        )(state, action, *flat_params)

    return forward


# ------------------------- pure-JAX reference (check) -----------------------

def ref_forward(params, state, action):
    def lin(x, w, b):
        return x @ w + b

    x = jnp.concatenate([state, action], -1)
    w, b, g, beta = params["s1"]
    n = jnp.maximum(_layernorm(lin(x, w, b), g, beta), 0.0)
    for (w1, b1, w2, b2, g, beta) in params["res"]:
        h = jnp.maximum(lin(n, w1, b1), 0.0)
        x2 = lin(h, w2, b2)
        n = _layernorm(jnp.concatenate([n + x2, state, action], -1), g, beta)

    def head(fp, meta):
        w1, b1, w2, b2, w3, b3, g, beta = fp
        wm, bm = meta
        s1 = lin(jnp.maximum(lin(n, w1, b1), 0.0), w2, b2)
        s2 = lin(n, w3, b3)
        return _layernorm(s1 + s2, g, beta) + lin(action, wm, bm)

    return (head(params["fp1"], params["meta1"]),
            head(params["fp2"], params["meta2"]),
            head(params["fp3"], params["meta3"]))


# ----------------------------------- main -----------------------------------

if __name__ == "__main__":
    # TODO(synk): DQNNET.act() (host-side argmax + .item()) is plain Python glue
    # and is intentionally not translated to a kernel.
    B, n_s, n_a = 8, 8, 8
    input_num = n_s + n_a       # concat(state, action)
    output_num = 32
    num_layer = 2
    n_1, n_2, n_3 = 16, 32, 8

    key = jax.random.PRNGKey(0)
    kp, ks, ka = jax.random.split(key, 3)
    params, out_c = init_params(kp, input_num, output_num, num_layer,
                                n_s, n_a, n_1, n_2, n_3)
    state = jax.random.normal(ks, (B, n_s), jnp.float32)
    action = jax.random.normal(ka, (B, n_a), jnp.float32)

    flat_params, head_dims = prepare_fused_params(params, n_s)
    forward = make_dqnnet_forward(num_layer, head_dims, out_c)

    out = forward(state, action, flat_params)
    out = jax.block_until_ready(out)

    ref = ref_forward(params, state, action)
    for o, r in zip(out, ref):
        np.testing.assert_allclose(np.asarray(o), np.asarray(r),
                                   rtol=1e-4, atol=1e-4)

    print("KERNEL_OK")
</pallas_src>

<mosaic_0001>
module attributes {stable_mosaic.version = 11 : i64} {
  func.func @kernel(%arg0: i32, %arg1: memref<8x8xf32, #tpu.memory_space<vmem>>, %arg2: memref<8x8xf32, #tpu.memory_space<vmem>>, %arg3: memref<8x32xf32, #tpu.memory_space<vmem>>, %arg4: memref<8x32xf32, #tpu.memory_space<vmem>>, %arg5: memref<1x32xf32, #tpu.memory_space<vmem>>, %arg6: memref<1x32xf32, #tpu.memory_space<vmem>>, %arg7: memref<1x32xf32, #tpu.memory_space<vmem>>, %arg8: memref<32x64xf32, #tpu.memory_space<vmem>>, %arg9: memref<1x64xf32, #tpu.memory_space<vmem>>, %arg10: memref<64x32xf32, #tpu.memory_space<vmem>>, %arg11: memref<1x32xf32, #tpu.memory_space<vmem>>, %arg12: memref<1x48xf32, #tpu.memory_space<vmem>>, %arg13: memref<1x48xf32, #tpu.memory_space<vmem>>, %arg14: memref<48x96xf32, #tpu.memory_space<vmem>>, %arg15: memref<1x96xf32, #tpu.memory_space<vmem>>, %arg16: memref<96x48xf32, #tpu.memory_space<vmem>>, %arg17: memref<1x48xf32, #tpu.memory_space<vmem>>, %arg18: memref<1x64xf32, #tpu.memory_space<vmem>>, %arg19: memref<1x64xf32, #tpu.memory_space<vmem>>, %arg20: memref<64x384xf32, #tpu.memory_space<vmem>>, %arg21: memref<1x384xf32, #tpu.memory_space<vmem>>, %arg22: memref<384x56xf32, #tpu.memory_space<vmem>>, %arg23: memref<1x56xf32, #tpu.memory_space<vmem>>, %arg24: memref<64x56xf32, #tpu.memory_space<vmem>>, %arg25: memref<1x56xf32, #tpu.memory_space<vmem>>, %arg26: memref<8x56xf32, #tpu.memory_space<vmem>>, %arg27: memref<1x56xf32, #tpu.memory_space<vmem>>, %arg28: memref<1x16xf32, #tpu.memory_space<vmem>>, %arg29: memref<1x16xf32, #tpu.memory_space<vmem>>, %arg30: memref<1x32xf32, #tpu.memory_space<vmem>>, %arg31: memref<1x32xf32, #tpu.memory_space<vmem>>, %arg32: memref<1x8xf32, #tpu.memory_space<vmem>>, %arg33: memref<1x8xf32, #tpu.memory_space<vmem>>, %arg34: memref<8x16xf32, #tpu.memory_space<vmem>>, %arg35: memref<8x32xf32, #tpu.memory_space<vmem>>, %arg36: memref<8x8xf32, #tpu.memory_space<vmem>>, %arg37: memref<8x64xf32, #tpu.memory_space<vmem>>, %arg38: memref<8x56xf32, #tpu.memory_space<vmem>>, %arg39: memref<8x56xf32, #tpu.memory_space<vmem>>) attributes {dimension_semantics = [#tpu.dimension_semantics<parallel>], iteration_bounds = array<i64: 1>, scalar_prefetch = 0 : i64, scratch_operands = 3 : i64, tpu.core_type = #tpu.core_type<tc>, window_params = [{transform_indices = @transform_0, window_bounds = array<i64: 8, 8>}, {transform_indices = @transform_1, window_bounds = array<i64: 8, 8>}, {pipeline_mode = #tpu.pipeline_mode<synchronous>, transform_indices = @transform_2, window_bounds = array<i64: 8, 32>}, {pipeline_mode = #tpu.pipeline_mode<synchronous>, transform_indices = @transform_3, window_bounds = array<i64: 8, 32>}, {pipeline_mode = #tpu.pipeline_mode<synchronous>, transform_indices = @transform_4, window_bounds = array<i64: 1, 32>}, {pipeline_mode = #tpu.pipeline_mode<synchronous>, transform_indices = @transform_5, window_bounds = array<i64: 1, 32>}, {pipeline_mode = #tpu.pipeline_mode<synchronous>, transform_indices = @transform_6, window_bounds = array<i64: 1, 32>}, {pipeline_mode = #tpu.pipeline_mode<synchronous>, transform_indices = @transform_7, window_bounds = array<i64: 32, 64>}, {pipeline_mode = #tpu.pipeline_mode<synchronous>, transform_indices = @transform_8, window_bounds = array<i64: 1, 64>}, {pipeline_mode = #tpu.pipeline_mode<synchronous>, transform_indices = @transform_9, window_bounds = array<i64: 64, 32>}, {pipeline_mode = #tpu.pipeline_mode<synchronous>, transform_indices = @transform_10, window_bounds = array<i64: 1, 32>}, {pipeline_mode = #tpu.pipeline_mode<synchronous>, transform_indices = @transform_11, window_bounds = array<i64: 1, 48>}, {pipeline_mode = #tpu.pipeline_mode<synchronous>, transform_indices = @transform_12, window_bounds = array<i64: 1, 48>}, {pipeline_mode = #tpu.pipeline_mode<synchronous>, transform_indices = @transform_13, window_bounds = array<i64: 48, 96>}, {pipeline_mode = #tpu.pipeline_mode<synchronous>, transform_indices = @transform_14, window_bounds = array<i64: 1, 96>}, {pipeline_mode = #tpu.pipeline_mode<synchronous>, transform_indices = @transform_15, window_bounds = array<i64: 96, 48>}, {pipeline_mode = #tpu.pipeline_mode<synchronous>, transform_indices = @transform_16, window_bounds = array<i64: 1, 48>}, {pipeline_mode = #tpu.pipeline_mode<synchronous>, transform_indices = @transform_17, window_bounds = array<i64: 1, 64>}, {pipeline_mode = #tpu.pipeline_mode<synchronous>, transform_indices = @transform_18, window_bounds = array<i64: 1, 64>}, {pipeline_mode = #tpu.pipeline_mode<synchronous>, transform_indices = @transform_19, window_bounds = array<i64: 64, 384>}, {pipeline_mode = #tpu.pipeline_mode<synchronous>, transform_indices = @transform_20, window_bounds = array<i64: 1, 384>}, {pipeline_mode = #tpu.pipeline_mode<synchronous>, transform_indices = @transform_21, window_bounds = array<i64: 384, 56>}, {pipeline_mode = #tpu.pipeline_mode<synchronous>, transform_indices = @transform_22, window_bounds = array<i64: 1, 56>}, {pipeline_mode = #tpu.pipeline_mode<synchronous>, transform_indices = @transform_23, window_bounds = array<i64: 64, 56>}, {pipeline_mode = #tpu.pipeline_mode<synchronous>, transform_indices = @transform_24, window_bounds = array<i64: 1, 56>}, {pipeline_mode = #tpu.pipeline_mode<synchronous>, transform_indices = @transform_25, window_bounds = array<i64: 8, 56>}, {pipeline_mode = #tpu.pipeline_mode<synchronous>, transform_indices = @transform_26, window_bounds = array<i64: 1, 56>}, {pipeline_mode = #tpu.pipeline_mode<synchronous>, transform_indices = @transform_27, window_bounds = array<i64: 1, 16>}, {pipeline_mode = #tpu.pipeline_mode<synchronous>, transform_indices = @transform_28, window_bounds = array<i64: 1, 16>}, {pipeline_mode = #tpu.pipeline_mode<synchronous>, transform_indices = @transform_29, window_bounds = array<i64: 1, 32>}, {pipeline_mode = #tpu.pipeline_mode<synchronous>, transform_indices = @transform_30, window_bounds = array<i64: 1, 32>}, {pipeline_mode = #tpu.pipeline_mode<synchronous>, transform_indices = @transform_31, window_bounds = array<i64: 1, 8>}, {pipeline_mode = #tpu.pipeline_mode<synchronous>, transform_indices = @transform_32, window_bounds = array<i64: 1, 8>}, {transform_indices = @transform_33, window_bounds = array<i64: 8, 16>}, {transform_indices = @transform_34, window_bounds = array<i64: 8, 32>}, {transform_indices = @transform_35, window_bounds = array<i64: 8, 8>}]} {
    %c0 = arith.constant 0 : index
    %c0_0 = arith.constant 0 : index
    %0 = vector.load %arg1[%c0, %c0_0] : memref<8x8xf32, #tpu.memory_space<vmem>>, vector<8x8xf32>
    %c0_1 = arith.constant 0 : index
    %c0_2 = arith.constant 0 : index
    %1 = vector.load %arg2[%c0_1, %c0_2] : memref<8x8xf32, #tpu.memory_space<vmem>>, vector<8x8xf32>
    %c0_3 = arith.constant 0 : index
    %c0_4 = arith.constant 0 : index
    %2 = vector.load %arg3[%c0_3, %c0_4] : memref<8x32xf32, #tpu.memory_space<vmem>>, vector<8x32xf32>
    %cst = arith.constant dense<0.000000e+00> : vector<8x32xf32>
    %3 = tpu.matmul %0, %2, %cst {dimension_numbers = #tpu.dot_dimension_numbers<[1], [0], [0], [1], [0, 0, 1, 1], [], []>} : vector<8x8xf32>, vector<8x32xf32>, vector<8x32xf32> -> vector<8x32xf32>
    %c0_5 = arith.constant 0 : index
    %c0_6 = arith.constant 0 : index
    %4 = vector.load %arg4[%c0_5, %c0_6] : memref<8x32xf32, #tpu.memory_space<vmem>>, vector<8x32xf32>
    %cst_7 = arith.constant dense<0.000000e+00> : vector<8x32xf32>
    %5 = tpu.matmul %1, %4, %cst_7 {dimension_numbers = #tpu.dot_dimension_numbers<[1], [0], [0], [1], [0, 0, 1, 1], [], []>} : vector<8x8xf32>, vector<8x32xf32>, vector<8x32xf32> -> vector<8x32xf32>
    %6 = arith.addf %3, %5 : vector<8x32xf32>
    %c0_8 = arith.constant 0 : index
    %c0_9 = arith.constant 0 : index
    %7 = vector.load %arg5[%c0_8, %c0_9] : memref<1x32xf32, #tpu.memory_space<vmem>>, vector<1x32xf32>
    %8 = vector.broadcast %7 : vector<1x32xf32> to vector<8x32xf32>
    %9 = arith.addf %6, %8 : vector<8x32xf32>
    %c0_10 = arith.constant 0 : index
    %c0_11 = arith.constant 0 : index
    %10 = vector.load %arg6[%c0_10, %c0_11] : memref<1x32xf32, #tpu.memory_space<vmem>>, vector<1x32xf32>
    %c0_12 = arith.constant 0 : index
    %c0_13 = arith.constant 0 : index
    %11 = vector.load %arg7[%c0_12, %c0_13] : memref<1x32xf32, #tpu.memory_space<vmem>>, vector<1x32xf32>
    %cst_14 = arith.constant dense<0.000000e+00> : vector<8xf32>
    %12 = vector.multi_reduction <add>, %9, %cst_14 [1] : vector<8x32xf32> to vector<8xf32>
    %13 = vector.shape_cast %12 : vector<8xf32> to vector<8x1xf32>
    %cst_15 = arith.constant 3.200000e+01 : f32
    %14 = vector.broadcast %cst_15 : f32 to vector<8x1xf32>
    %15 = arith.divf %13, %14 : vector<8x1xf32>
    %16 = vector.broadcast %15 : vector<8x1xf32> to vector<8x32xf32>
    %17 = arith.subf %9, %16 : vector<8x32xf32>
    %18 = arith.mulf %17, %17 : vector<8x32xf32>
    %cst_16 = arith.constant dense<0.000000e+00> : vector<8xf32>
    %19 = vector.multi_reduction <add>, %18, %cst_16 [1] : vector<8x32xf32> to vector<8xf32>
    %20 = vector.shape_cast %19 : vector<8xf32> to vector<8x1xf32>
    %cst_17 = arith.constant 3.200000e+01 : f32
    %21 = vector.broadcast %cst_17 : f32 to vector<8x1xf32>
    %22 = arith.divf %20, %21 : vector<8x1xf32>
    %23 = vector.broadcast %15 : vector<8x1xf32> to vector<8x32xf32>
    %24 = arith.subf %9, %23 : vector<8x32xf32>
    %cst_18 = arith.constant 9.99999974E-6 : f32
    %25 = vector.broadcast %cst_18 : f32 to vector<8x1xf32>
    %26 = arith.addf %22, %25 : vector<8x1xf32>
    %27 = math.rsqrt %26 : vector<8x1xf32>
    %28 = vector.broadcast %27 : vector<8x1xf32> to vector<8x32xf32>
    %29 = arith.mulf %24, %28 : vector<8x32xf32>
    %30 = vector.broadcast %10 : vector<1x32xf32> to vector<8x32xf32>
    %31 = arith.mulf %29, %30 : vector<8x32xf32>
    %32 = vector.broadcast %11 : vector<1x32xf32> to vector<8x32xf32>
    %33 = arith.addf %31, %32 : vector<8x32xf32>
    %cst_19 = arith.constant 0.000000e+00 : f32
    %34 = vector.broadcast %cst_19 : f32 to vector<8x32xf32>
    %35 = arith.maximumf %33, %34 : vector<8x32xf32>
    %c0_20 = arith.constant 0 : index
    %c0_21 = arith.constant 0 : index
    %36 = vector.load %arg8[%c0_20, %c0_21] : memref<32x64xf32, #tpu.memory_space<vmem>>, vector<32x64xf32>
    %cst_22 = arith.constant dense<0.000000e+00> : vector<8x64xf32>
    %37 = tpu.matmul %35, %36, %cst_22 {dimension_numbers = #tpu.dot_dimension_numbers<[1], [0], [0], [1], [0, 0, 1, 1], [], []>} : vector<8x32xf32>, vector<32x64xf32>, vector<8x64xf32> -> vector<8x64xf32>
    %c0_23 = arith.constant 0 : index
    %c0_24 = arith.constant 0 : index
    %38 = vector.load %arg9[%c0_23, %c0_24] : memref<1x64xf32, #tpu.memory_space<vmem>>, vector<1x64xf32>
    %39 = vector.broadcast %38 : vector<1x64xf32> to vector<8x64xf32>
    %40 = arith.addf %37, %39 : vector<8x64xf32>
    %cst_25 = arith.constant 0.000000e+00 : f32
    %41 = vector.broadcast %cst_25 : f32 to vector<8x64xf32>
    %42 = arith.maximumf %40, %41 : vector<8x64xf32>
    %c0_26 = arith.constant 0 : index
    %c0_27 = arith.constant 0 : index
    %43 = vector.load %arg10[%c0_26, %c0_27] : memref<64x32xf32, #tpu.memory_space<vmem>>, vector<64x32xf32>
    %cst_28 = arith.constant dense<0.000000e+00> : vector<8x32xf32>
    %44 = tpu.matmul %42, %43, %cst_28 {dimension_numbers = #tpu.dot_dimension_numbers<[1], [0], [0], [1], [0, 0, 1, 1], [], []>} : vector<8x64xf32>, vector<64x32xf32>, vector<8x32xf32> -> vector<8x32xf32>
    %c0_29 = arith.constant 0 : index
    %c0_30 = arith.constant 0 : index
    %45 = vector.load %arg11[%c0_29, %c0_30] : memref<1x32xf32, #tpu.memory_space<vmem>>, vector<1x32xf32>
    %46 = vector.broadcast %45 : vector<1x32xf32> to vector<8x32xf32>
    %47 = arith.addf %44, %46 : vector<8x32xf32>
    %48 = arith.addf %35, %47 : vector<8x32xf32>
    %c0_31 = arith.constant 0 : index
    %c0_32 = arith.constant 0 : index
    %49 = vector.load %arg37[%c0_31, %c0_32] : memref<8x64xf32, #tpu.memory_space<vmem>>, vector<8x32xf32>
    tpu.vector_store %arg37[%c0_31, %c0_32], %48 {strides = array<i32>} : memref<8x64xf32, #tpu.memory_space<vmem>>, vector<8x32xf32>,
    %c0_33 = arith.constant 0 : index
    %c32 = arith.constant 32 : index
    %50 = vector.load %arg37[%c0_33, %c32] : memref<8x64xf32, #tpu.memory_space<vmem>>, vector<8x8xf32>
    tpu.vector_store %arg37[%c0_33, %c32], %0 {strides = array<i32>} : memref<8x64xf32, #tpu.memory_space<vmem>>, vector<8x8xf32>,
    %c0_34 = arith.constant 0 : index
    %c40 = arith.constant 40 : index
    %51 = vector.load %arg37[%c0_34, %c40] : memref<8x64xf32, #tpu.memory_space<vmem>>, vector<8x8xf32>
    tpu.vector_store %arg37[%c0_34, %c40], %1 {strides = array<i32>} : memref<8x64xf32, #tpu.memory_space<vmem>>, vector<8x8xf32>,
    %c0_35 = arith.constant 0 : index
    %c0_36 = arith.constant 0 : index
    %52 = vector.load %arg37[%c0_35, %c0_36] : memref<8x64xf32, #tpu.memory_space<vmem>>, vector<8x48xf32>
    %c0_37 = arith.constant 0 : index
    %c0_38 = arith.constant 0 : index
    %53 = vector.load %arg12[%c0_37, %c0_38] : memref<1x48xf32, #tpu.memory_space<vmem>>, vector<1x48xf32>
    %c0_39 = arith.constant 0 : index
    %c0_40 = arith.constant 0 : index
    %54 = vector.load %arg13[%c0_39, %c0_40] : memref<1x48xf32, #tpu.memory_space<vmem>>, vector<1x48xf32>
    %cst_41 = arith.constant dense<0.000000e+00> : vector<8xf32>
    %55 = vector.multi_reduction <add>, %52, %cst_41 [1] : vector<8x48xf32> to vector<8xf32>
    %56 = vector.shape_cast %55 : vector<8xf32> to vector<8x1xf32>
    %cst_42 = arith.constant 4.800000e+01 : f32
    %57 = vector.broadcast %cst_42 : f32 to vector<8x1xf32>
    %58 = arith.divf %56, %57 : vector<8x1xf32>
    %59 = vector.broadcast %58 : vector<8x1xf32> to vector<8x48xf32>
    %60 = arith.subf %52, %59 : vector<8x48xf32>
    %61 = arith.mulf %60, %60 : vector<8x48xf32>
    %cst_43 = arith.constant dense<0.000000e+00> : vector<8xf32>
    %62 = vector.multi_reduction <add>, %61, %cst_43 [1] : vector<8x48xf32> to vector<8xf32>
    %63 = vector.shape_cast %62 : vector<8xf32> to vector<8x1xf32>
    %cst_44 = arith.constant 4.800000e+01 : f32
    %64 = vector.broadcast %cst_44 : f32 to vector<8x1xf32>
    %65 = arith.divf %63, %64 : vector<8x1xf32>
    %66 = vector.broadcast %58 : vector<8x1xf32> to vector<8x48xf32>
    %67 = arith.subf %52, %66 : vector<8x48xf32>
    %cst_45 = arith.constant 9.99999974E-6 : f32
    %68 = vector.broadcast %cst_45 : f32 to vector<8x1xf32>
    %69 = arith.addf %65, %68 : vector<8x1xf32>
    %70 = math.rsqrt %69 : vector<8x1xf32>
    %71 = vector.broadcast %70 : vector<8x1xf32> to vector<8x48xf32>
    %72 = arith.mulf %67, %71 : vector<8x48xf32>
    %73 = vector.broadcast %53 : vector<1x48xf32> to vector<8x48xf32>
    %74 = arith.mulf %72, %73 : vector<8x48xf32>
    %75 = vector.broadcast %54 : vector<1x48xf32> to vector<8x48xf32>
    %76 = arith.addf %74, %75 : vector<8x48xf32>
    %c0_46 = arith.constant 0 : index
    %c0_47 = arith.constant 0 : index
    %77 = vector.load %arg14[%c0_46, %c0_47] : memref<48x96xf32, #tpu.memory_space<vmem>>, vector<48x96xf32>
    %cst_48 = arith.constant dense<0.000000e+00> : vector<8x96xf32>
    %78 = tpu.matmul %76, %77, %cst_48 {dimension_numbers = #tpu.dot_dimension_numbers<[1], [0], [0], [1], [0, 0, 1, 1], [], []>} : vector<8x48xf32>, vector<48x96xf32>, vector<8x96xf32> -> vector<8x96xf32>
    %c0_49 = arith.constant 0 : index
    %c0_50 = arith.constant 0 : index
    %79 = vector.load %arg15[%c0_49, %c0_50] : memref<1x96xf32, #tpu.memory_space<vmem>>, vector<1x96xf32>
    %80 = vector.broadcast %79 : vector<1x96xf32> to vector<8x96xf32>
    %81 = arith.addf %78, %80 : vector<8x96xf32>
    %cst_51 = arith.constant 0.000000e+00 : f32
    %82 = vector.broadcast %cst_51 : f32 to vector<8x96xf32>
    %83 = arith.maximumf %81, %82 : vector<8x96xf32>
    %c0_52 = arith.constant 0 : index
    %c0_53 = arith.constant 0 : index
    %84 = vector.load %arg16[%c0_52, %c0_53] : memref<96x48xf32, #tpu.memory_space<vmem>>, vector<96x48xf32>
    %cst_54 = arith.constant dense<0.000000e+00> : vector<8x48xf32>
    %85 = tpu.matmul %83, %84, %cst_54 {dimension_numbers = #tpu.dot_dimension_numbers<[1], [0], [0], [1], [0, 0, 1, 1], [], []>} : vector<8x96xf32>, vector<96x48xf32>, vector<8x48xf32> -> vector<8x48xf32>
    %c0_55 = arith.constant 0 : index
    %c0_56 = arith.constant 0 : index
    %86 = vector.load %arg17[%c0_55, %c0_56] : memref<1x48xf32, #tpu.memory_space<vmem>>, vector<1x48xf32>
    %87 = vector.broadcast %86 : vector<1x48xf32> to vector<8x48xf32>
    %88 = arith.addf %85, %87 : vector<8x48xf32>
    %89 = arith.addf %76, %88 : vector<8x48xf32>
    %c0_57 = arith.constant 0 : index
    %c0_58 = arith.constant 0 : index
    %90 = vector.load %arg37[%c0_57, %c0_58] : memref<8x64xf32, #tpu.memory_space<vmem>>, vector<8x48xf32>
    tpu.vector_store %arg37[%c0_57, %c0_58], %89 {strides = array<i32>} : memref<8x64xf32, #tpu.memory_space<vmem>>, vector<8x48xf32>,
    %c0_59 = arith.constant 0 : index
    %c48 = arith.constant 48 : index
    %91 = vector.load %arg37[%c0_59, %c48] : memref<8x64xf32, #tpu.memory_space<vmem>>, vector<8x8xf32>
    tpu.vector_store %arg37[%c0_59, %c48], %0 {strides = array<i32>} : memref<8x64xf32, #tpu.memory_space<vmem>>, vector<8x8xf32>,
    %c0_60 = arith.constant 0 : index
    %c56 = arith.constant 56 : index
    %92 = vector.load %arg37[%c0_60, %c56] : memref<8x64xf32, #tpu.memory_space<vmem>>, vector<8x8xf32>
    tpu.vector_store %arg37[%c0_60, %c56], %1 {strides = array<i32>} : memref<8x64xf32, #tpu.memory_space<vmem>>, vector<8x8xf32>,
    %c0_61 = arith.constant 0 : index
    %c0_62 = arith.constant 0 : index
    %93 = vector.load %arg37[%c0_61, %c0_62] : memref<8x64xf32, #tpu.memory_space<vmem>>, vector<8x64xf32>
    %c0_63 = arith.constant 0 : index
    %c0_64 = arith.constant 0 : index
    %94 = vector.load %arg18[%c0_63, %c0_64] : memref<1x64xf32, #tpu.memory_space<vmem>>, vector<1x64xf32>
    %c0_65 = arith.constant 0 : index
    %c0_66 = arith.constant 0 : index
    %95 = vector.load %arg19[%c0_65, %c0_66] : memref<1x64xf32, #tpu.memory_space<vmem>>, vector<1x64xf32>
    %cst_67 = arith.constant dense<0.000000e+00> : vector<8xf32>
    %96 = vector.multi_reduction <add>, %93, %cst_67 [1] : vector<8x64xf32> to vector<8xf32>
    %97 = vector.shape_cast %96 : vector<8xf32> to vector<8x1xf32>
    %cst_68 = arith.constant 6.400000e+01 : f32
    %98 = vector.broadcast %cst_68 : f32 to vector<8x1xf32>
    %99 = arith.divf %97, %98 : vector<8x1xf32>
    %100 = vector.broadcast %99 : vector<8x1xf32> to vector<8x64xf32>
    %101 = arith.subf %93, %100 : vector<8x64xf32>
    %102 = arith.mulf %101, %101 : vector<8x64xf32>
    %cst_69 = arith.constant dense<0.000000e+00> : vector<8xf32>
    %103 = vector.multi_reduction <add>, %102, %cst_69 [1] : vector<8x64xf32> to vector<8xf32>
    %104 = vector.shape_cast %103 : vector<8xf32> to vector<8x1xf32>
    %cst_70 = arith.constant 6.400000e+01 : f32
    %105 = vector.broadcast %cst_70 : f32 to vector<8x1xf32>
    %106 = arith.divf %104, %105 : vector<8x1xf32>
    %107 = vector.broadcast %99 : vector<8x1xf32> to vector<8x64xf32>
    %108 = arith.subf %93, %107 : vector<8x64xf32>
    %cst_71 = arith.constant 9.99999974E-6 : f32
    %109 = vector.broadcast %cst_71 : f32 to vector<8x1xf32>
    %110 = arith.addf %106, %109 : vector<8x1xf32>
    %111 = math.rsqrt %110 : vector<8x1xf32>
    %112 = vector.broadcast %111 : vector<8x1xf32> to vector<8x64xf32>
    %113 = arith.mulf %108, %112 : vector<8x64xf32>
    %114 = vector.broadcast %94 : vector<1x64xf32> to vector<8x64xf32>
    %115 = arith.mulf %113, %114 : vector<8x64xf32>
    %116 = vector.broadcast %95 : vector<1x64xf32> to vector<8x64xf32>
    %117 = arith.addf %115, %116 : vector<8x64xf32>
    %c0_72 = arith.constant 0 : index
    %c0_73 = arith.constant 0 : index
    %118 = vector.load %arg20[%c0_72, %c0_73] : memref<64x384xf32, #tpu.memory_space<vmem>>, vector<64x384xf32>
    %cst_74 = arith.constant dense<0.000000e+00> : vector<8x384xf32>
    %119 = tpu.matmul %117, %118, %cst_74 {dimension_numbers = #tpu.dot_dimension_numbers<[1], [0], [0], [1], [0, 0, 1, 1], [], []>} : vector<8x64xf32>, vector<64x384xf32>, vector<8x384xf32> -> vector<8x384xf32>
    %c0_75 = arith.constant 0 : index
    %c0_76 = arith.constant 0 : index
    %120 = vector.load %arg21[%c0_75, %c0_76] : memref<1x384xf32, #tpu.memory_space<vmem>>, vector<1x384xf32>
    %121 = vector.broadcast %120 : vector<1x384xf32> to vector<8x384xf32>
    %122 = arith.addf %119, %121 : vector<8x384xf32>
    %cst_77 = arith.constant 0.000000e+00 : f32
    %123 = vector.broadcast %cst_77 : f32 to vector<8x384xf32>
    %124 = arith.maximumf %122, %123 : vector<8x384xf32>
    %c0_78 = arith.constant 0 : index
    %c0_79 = arith.constant 0 : index
    %125 = vector.load %arg22[%c0_78, %c0_79] : memref<384x56xf32, #tpu.memory_space<vmem>>, vector<384x56xf32>
    %cst_80 = arith.constant dense<0.000000e+00> : vector<8x56xf32>
    %126 = tpu.matmul %124, %125, %cst_80 {dimension_numbers = #tpu.dot_dimension_numbers<[1], [0], [0], [1], [0, 0, 1, 1], [], []>} : vector<8x384xf32>, vector<384x56xf32>, vector<8x56xf32> -> vector<8x56xf32>
    %c0_81 = arith.constant 0 : index
    %c0_82 = arith.constant 0 : index
    %127 = vector.load %arg23[%c0_81, %c0_82] : memref<1x56xf32, #tpu.memory_space<vmem>>, vector<1x56xf32>
    %128 = vector.broadcast %127 : vector<1x56xf32> to vector<8x56xf32>
    %129 = arith.addf %126, %128 : vector<8x56xf32>
    %c0_83 = arith.constant 0 : index
    %c0_84 = arith.constant 0 : index
    %130 = vector.load %arg24[%c0_83, %c0_84] : memref<64x56xf32, #tpu.memory_space<vmem>>, vector<64x56xf32>
    %cst_85 = arith.constant dense<0.000000e+00> : vector<8x56xf32>
    %131 = tpu.matmul %117, %130, %cst_85 {dimension_numbers = #tpu.dot_dimension_numbers<[1], [0], [0], [1], [0, 0, 1, 1], [], []>} : vector<8x64xf32>, vector<64x56xf32>, vector<8x56xf32> -> vector<8x56xf32>
    %c0_86 = arith.constant 0 : index
    %c0_87 = arith.constant 0 : index
    %132 = vector.load %arg25[%c0_86, %c0_87] : memref<1x56xf32, #tpu.memory_space<vmem>>, vector<1x56xf32>
    %133 = vector.broadcast %132 : vector<1x56xf32> to vector<8x56xf32>
    %134 = arith.addf %131, %133 : vector<8x56xf32>
    %135 = arith.addf %129, %134 : vector<8x56xf32>
    %c0_88 = arith.constant 0 : index
    %c0_89 = arith.constant 0 : index
    %136 = vector.load %arg38[%c0_88, %c0_89] : memref<8x56xf32, #tpu.memory_space<vmem>>, vector<8x56xf32>
    tpu.vector_store %arg38[%c0_88, %c0_89], %135 {strides = array<i32>} : memref<8x56xf32, #tpu.memory_space<vmem>>, vector<8x56xf32>,
    %c0_90 = arith.constant 0 : index
    %c0_91 = arith.constant 0 : index
    %137 = vector.load %arg26[%c0_90, %c0_91] : memref<8x56xf32, #tpu.memory_space<vmem>>, vector<8x56xf32>
    %cst_92 = arith.constant dense<0.000000e+00> : vector<8x56xf32>
    %138 = tpu.matmul %1, %137, %cst_92 {dimension_numbers = #tpu.dot_dimension_numbers<[1], [0], [0], [1], [0, 0, 1, 1], [], []>} : vector<8x8xf32>, vector<8x56xf32>, vector<8x56xf32> -> vector<8x56xf32>
    %c0_93 = arith.constant 0 : index
    %c0_94 = arith.constant 0 : index
    %139 = vector.load %arg27[%c0_93, %c0_94] : memref<1x56xf32, #tpu.memory_space<vmem>>, vector<1x56xf32>
    %140 = vector.broadcast %139 : vector<1x56xf32> to vector<8x56xf32>
    %141 = arith.addf %138, %140 : vector<8x56xf32>
    %c0_95 = arith.constant 0 : index
    %c0_96 = arith.constant 0 : index
    %142 = vector.load %arg39[%c0_95, %c0_96] : memref<8x56xf32, #tpu.memory_space<vmem>>, vector<8x56xf32>
    tpu.vector_store %arg39[%c0_95, %c0_96], %141 {strides = array<i32>} : memref<8x56xf32, #tpu.memory_space<vmem>>, vector<8x56xf32>,
    %c0_97 = arith.constant 0 : index
    %c0_98 = arith.constant 0 : index
    %143 = vector.load %arg38[%c0_97, %c0_98] : memref<8x56xf32, #tpu.memory_space<vmem>>, vector<8x16xf32>
    %c0_99 = arith.constant 0 : index
    %c0_100 = arith.constant 0 : index
    %144 = vector.load %arg28[%c0_99, %c0_100] : memref<1x16xf32, #tpu.memory_space<vmem>>, vector<1x16xf32>
    %c0_101 = arith.constant 0 : index
    %c0_102 = arith.constant 0 : index
    %145 = vector.load %arg29[%c0_101, %c0_102] : memref<1x16xf32, #tpu.memory_space<vmem>>, vector<1x16xf32>
    %cst_103 = arith.constant dense<0.000000e+00> : vector<8xf32>
    %146 = vector.multi_reduction <add>, %143, %cst_103 [1] : vector<8x16xf32> to vector<8xf32>
    %147 = vector.shape_cast %146 : vector<8xf32> to vector<8x1xf32>
    %cst_104 = arith.constant 1.600000e+01 : f32
    %148 = vector.broadcast %cst_104 : f32 to vector<8x1xf32>
    %149 = arith.divf %147, %148 : vector<8x1xf32>
    %150 = vector.broadcast %149 : vector<8x1xf32> to vector<8x16xf32>
    %151 = arith.subf %143, %150 : vector<8x16xf32>
    %152 = arith.mulf %151, %151 : vector<8x16xf32>
    %cst_105 = arith.constant dense<0.000000e+00> : vector<8xf32>
    %153 = vector.multi_reduction <add>, %152, %cst_105 [1] : vector<8x16xf32> to vector<8xf32>
    %154 = vector.shape_cast %153 : vector<8xf32> to vector<8x1xf32>
    %cst_106 = arith.constant 1.600000e+01 : f32
    %155 = vector.broadcast %cst_106 : f32 to vector<8x1xf32>
    %156 = arith.divf %154, %155 : vector<8x1xf32>
    %157 = vector.broadcast %149 : vector<8x1xf32> to vector<8x16xf32>
    %158 = arith.subf %143, %157 : vector<8x16xf32>
    %cst_107 = arith.constant 9.99999974E-6 : f32
    %159 = vector.broadcast %cst_107 : f32 to vector<8x1xf32>
    %160 = arith.addf %156, %159 : vector<8x1xf32>
    %161 = math.rsqrt %160 : vector<8x1xf32>
    %162 = vector.broadcast %161 : vector<8x1xf32> to vector<8x16xf32>
    %163 = arith.mulf %158, %162 : vector<8x16xf32>
    %164 = vector.broadcast %144 : vector<1x16xf32> to vector<8x16xf32>
    %165 = arith.mulf %163, %164 : vector<8x16xf32>
    %166 = vector.broadcast %145 : vector<1x16xf32> to vector<8x16xf32>
    %167 = arith.addf %165, %166 : vector<8x16xf32>
    %c0_108 = arith.constant 0 : index
    %c0_109 = arith.constant 0 : index
    %168 = vector.load %arg39[%c0_108, %c0_109] : memref<8x56xf32, #tpu.memory_space<vmem>>, vector<8x16xf32>
    %169 = arith.addf %167, %168 : vector<8x16xf32>
    %c0_110 = arith.constant 0 : index
    %c0_111 = arith.constant 0 : index
    %170 = vector.load %arg34[%c0_110, %c0_111] : memref<8x16xf32, #tpu.memory_space<vmem>>, vector<8x16xf32>
    tpu.vector_store %arg34[%c0_110, %c0_111], %169 {strides = array<i32>} : memref<8x16xf32, #tpu.memory_space<vmem>>, vector<8x16xf32>,
    %c0_112 = arith.constant 0 : index
    %c16 = arith.constant 16 : index
    %171 = vector.load %arg38[%c0_112, %c16] : memref<8x56xf32, #tpu.memory_space<vmem>>, vector<8x32xf32>
    %c0_113 = arith.constant 0 : index
    %c0_114 = arith.constant 0 : index
    %172 = vector.load %arg30[%c0_113, %c0_114] : memref<1x32xf32, #tpu.memory_space<vmem>>, vector<1x32xf32>
    %c0_115 = arith.constant 0 : index
    %c0_116 = arith.constant 0 : index
    %173 = vector.load %arg31[%c0_115, %c0_116] : memref<1x32xf32, #tpu.memory_space<vmem>>, vector<1x32xf32>
    %cst_117 = arith.constant dense<0.000000e+00> : vector<8xf32>
    %174 = vector.multi_reduction <add>, %171, %cst_117 [1] : vector<8x32xf32> to vector<8xf32>
    %175 = vector.shape_cast %174 : vector<8xf32> to vector<8x1xf32>
    %cst_118 = arith.constant 3.200000e+01 : f32
    %176 = vector.broadcast %cst_118 : f32 to vector<8x1xf32>
    %177 = arith.divf %175, %176 : vector<8x1xf32>
    %178 = vector.broadcast %177 : vector<8x1xf32> to vector<8x32xf32>
    %179 = arith.subf %171, %178 : vector<8x32xf32>
    %180 = arith.mulf %179, %179 : vector<8x32xf32>
    %cst_119 = arith.constant dense<0.000000e+00> : vector<8xf32>
    %181 = vector.multi_reduction <add>, %180, %cst_119 [1] : vector<8x32xf32> to vector<8xf32>
    %182 = vector.shape_cast %181 : vector<8xf32> to vector<8x1xf32>
    %cst_120 = arith.constant 3.200000e+01 : f32
    %183 = vector.broadcast %cst_120 : f32 to vector<8x1xf32>
    %184 = arith.divf %182, %183 : vector<8x1xf32>
    %185 = vector.broadcast %177 : vector<8x1xf32> to vector<8x32xf32>
    %186 = arith.subf %171, %185 : vector<8x32xf32>
    %cst_121 = arith.constant 9.99999974E-6 : f32
    %187 = vector.broadcast %cst_121 : f32 to vector<8x1xf32>
    %188 = arith.addf %184, %187 : vector<8x1xf32>
    %189 = math.rsqrt %188 : vector<8x1xf32>
    %190 = vector.broadcast %189 : vector<8x1xf32> to vector<8x32xf32>
    %191 = arith.mulf %186, %190 : vector<8x32xf32>
    %192 = vector.broadcast %172 : vector<1x32xf32> to vector<8x32xf32>
    %193 = arith.mulf %191, %192 : vector<8x32xf32>
    %194 = vector.broadcast %173 : vector<1x32xf32> to vector<8x32xf32>
    %195 = arith.addf %193, %194 : vector<8x32xf32>
    %c0_122 = arith.constant 0 : index
    %c16_123 = arith.constant 16 : index
    %196 = vector.load %arg39[%c0_122, %c16_123] : memref<8x56xf32, #tpu.memory_space<vmem>>, vector<8x32xf32>
    %197 = arith.addf %195, %196 : vector<8x32xf32>
    %c0_124 = arith.constant 0 : index
    %c0_125 = arith.constant 0 : index
    %198 = vector.load %arg35[%c0_124, %c0_125] : memref<8x32xf32, #tpu.memory_space<vmem>>, vector<8x32xf32>
    tpu.vector_store %arg35[%c0_124, %c0_125], %197 {strides = array<i32>} : memref<8x32xf32, #tpu.memory_space<vmem>>, vector<8x32xf32>,
    %c0_126 = arith.constant 0 : index
    %c48_127 = arith.constant 48 : index
    %199 = vector.load %arg38[%c0_126, %c48_127] : memref<8x56xf32, #tpu.memory_space<vmem>>, vector<8x8xf32>
    %c0_128 = arith.constant 0 : index
    %c0_129 = arith.constant 0 : index
    %200 = vector.load %arg32[%c0_128, %c0_129] : memref<1x8xf32, #tpu.memory_space<vmem>>, vector<1x8xf32>
    %c0_130 = arith.constant 0 : index
    %c0_131 = arith.constant 0 : index
    %201 = vector.load %arg33[%c0_130, %c0_131] : memref<1x8xf32, #tpu.memory_space<vmem>>, vector<1x8xf32>
    %cst_132 = arith.constant dense<0.000000e+00> : vector<8xf32>
    %202 = vector.multi_reduction <add>, %199, %cst_132 [1] : vector<8x8xf32> to vector<8xf32>
    %203 = vector.shape_cast %202 : vector<8xf32> to vector<8x1xf32>
    %cst_133 = arith.constant 8.000000e+00 : f32
    %204 = vector.broadcast %cst_133 : f32 to vector<8x1xf32>
    %205 = arith.divf %203, %204 : vector<8x1xf32>
    %206 = vector.broadcast %205 : vector<8x1xf32> to vector<8x8xf32>
    %207 = arith.subf %199, %206 : vector<8x8xf32>
    %208 = arith.mulf %207, %207 : vector<8x8xf32>
    %cst_134 = arith.constant dense<0.000000e+00> : vector<8xf32>
    %209 = vector.multi_reduction <add>, %208, %cst_134 [1] : vector<8x8xf32> to vector<8xf32>
    %210 = vector.shape_cast %209 : vector<8xf32> to vector<8x1xf32>
    %cst_135 = arith.constant 8.000000e+00 : f32
    %211 = vector.broadcast %cst_135 : f32 to vector<8x1xf32>
    %212 = arith.divf %210, %211 : vector<8x1xf32>
    %213 = vector.broadcast %205 : vector<8x1xf32> to vector<8x8xf32>
    %214 = arith.subf %199, %213 : vector<8x8xf32>
    %cst_136 = arith.constant 9.99999974E-6 : f32
    %215 = vector.broadcast %cst_136 : f32 to vector<8x1xf32>
    %216 = arith.addf %212, %215 : vector<8x1xf32>
    %217 = math.rsqrt %216 : vector<8x1xf32>
    %218 = vector.broadcast %217 : vector<8x1xf32> to vector<8x8xf32>
    %219 = arith.mulf %214, %218 : vector<8x8xf32>
    %220 = vector.broadcast %200 : vector<1x8xf32> to vector<8x8xf32>
    %221 = arith.mulf %219, %220 : vector<8x8xf32>
    %222 = vector.broadcast %201 : vector<1x8xf32> to vector<8x8xf32>
    %223 = arith.addf %221, %222 : vector<8x8xf32>
    %c0_137 = arith.constant 0 : index
    %c48_138 = arith.constant 48 : index
    %224 = vector.load %arg39[%c0_137, %c48_138] : memref<8x56xf32, #tpu.memory_space<vmem>>, vector<8x8xf32>
    %225 = arith.addf %223, %224 : vector<8x8xf32>
    %c0_139 = arith.constant 0 : index
    %c0_140 = arith.constant 0 : index
    %226 = vector.load %arg36[%c0_139, %c0_140] : memref<8x8xf32, #tpu.memory_space<vmem>>, vector<8x8xf32>
    tpu.vector_store %arg36[%c0_139, %c0_140], %225 {strides = array<i32>} : memref<8x8xf32, #tpu.memory_space<vmem>>, vector<8x8xf32>,
    return
  }
  func.func @transform_0(%arg0: i32) -> (i32, i32) {
    %c0_i32 = arith.constant 0 : i32
    %c0_i32_0 = arith.constant 0 : i32
    return %arg0, %c0_i32 : i32, i32
  }
  func.func @transform_1(%arg0: i32) -> (i32, i32) {
    %c0_i32 = arith.constant 0 : i32
    %c0_i32_0 = arith.constant 0 : i32
    return %arg0, %c0_i32 : i32, i32
  }
  func.func @transform_2(%arg0: i32) -> (i32, i32) {
    %c0_i32 = arith.constant 0 : i32
    %c0_i32_0 = arith.constant 0 : i32
    %c0_i32_1 = arith.constant 0 : i32
    return %c0_i32, %c0_i32_0 : i32, i32
  }
  func.func @transform_3(%arg0: i32) -> (i32, i32) {
    %c0_i32 = arith.constant 0 : i32
    %c0_i32_0 = arith.constant 0 : i32
    %c0_i32_1 = arith.constant 0 : i32
    return %c0_i32, %c0_i32_0 : i32, i32
  }
  func.func @transform_4(%arg0: i32) -> (i32, i32) {
    %c0_i32 = arith.constant 0 : i32
    %c0_i32_0 = arith.constant 0 : i32
    %c0_i32_1 = arith.constant 0 : i32
    return %c0_i32, %c0_i32_0 : i32, i32
  }
  func.func @transform_5(%arg0: i32) -> (i32, i32) {
    %c0_i32 = arith.constant 0 : i32
    %c0_i32_0 = arith.constant 0 : i32
    %c0_i32_1 = arith.constant 0 : i32
    return %c0_i32, %c0_i32_0 : i32, i32
  }
  func.func @transform_6(%arg0: i32) -> (i32, i32) {
    %c0_i32 = arith.constant 0 : i32
    %c0_i32_0 = arith.constant 0 : i32
    %c0_i32_1 = arith.constant 0 : i32
    return %c0_i32, %c0_i32_0 : i32, i32
  }
  func.func @transform_7(%arg0: i32) -> (i32, i32) {
    %c0_i32 = arith.constant 0 : i32
    %c0_i32_0 = arith.constant 0 : i32
    %c0_i32_1 = arith.constant 0 : i32
    return %c0_i32, %c0_i32_0 : i32, i32
  }
  func.func @transform_8(%arg0: i32) -> (i32, i32) {
    %c0_i32 = arith.constant 0 : i32
    %c0_i32_0 = arith.constant 0 : i32
    %c0_i32_1 = arith.constant 0 : i32
    return %c0_i32, %c0_i32_0 : i32, i32
  }
  func.func @transform_9(%arg0: i32) -> (i32, i32) {
    %c0_i32 = arith.constant 0 : i32
    %c0_i32_0 = arith.constant 0 : i32
    %c0_i32_1 = arith.constant 0 : i32
    return %c0_i32, %c0_i32_0 : i32, i32
  }
  func.func @transform_10(%arg0: i32) -> (i32, i32) {
    %c0_i32 = arith.constant 0 : i32
    %c0_i32_0 = arith.constant 0 : i32
    %c0_i32_1 = arith.constant 0 : i32
    return %c0_i32, %c0_i32_0 : i32, i32
  }
  func.func @transform_11(%arg0: i32) -> (i32, i32) {
    %c0_i32 = arith.constant 0 : i32
    %c0_i32_0 = arith.constant 0 : i32
    %c0_i32_1 = arith.constant 0 : i32
    return %c0_i32, %c0_i32_0 : i32, i32
  }
  func.func @transform_12(%arg0: i32) -> (i32, i32) {
    %c0_i32 = arith.constant 0 : i32
    %c0_i32_0 = arith.constant 0 : i32
    %c0_i32_1 = arith.constant 0 : i32
    return %c0_i32, %c0_i32_0 : i32, i32
  }
  func.func @transform_13(%arg0: i32) -> (i32, i32) {
    %c0_i32 = arith.constant 0 : i32
    %c0_i32_0 = arith.constant 0 : i32
    %c0_i32_1 = arith.constant 0 : i32
    return %c0_i32, %c0_i32_0 : i32, i32
  }
  func.func @transform_14(%arg0: i32) -> (i32, i32) {
    %c0_i32 = arith.constant 0 : i32
    %c0_i32_0 = arith.constant 0 : i32
    %c0_i32_1 = arith.constant 0 : i32
    return %c0_i32, %c0_i32_0 : i32, i32
  }
  func.func @transform_15(%arg0: i32) -> (i32, i32) {
    %c0_i32 = arith.constant 0 : i32
    %c0_i32_0 = arith.constant 0 : i32
    %c0_i32_1 = arith.constant 0 : i32
    return %c0_i32, %c0_i32_0 : i32, i32
  }
  func.func @transform_16(%arg0: i32) -> (i32, i32) {
    %c0_i32 = arith.constant 0 : i32
    %c0_i32_0 = arith.constant 0 : i32
    %c0_i32_1 = arith.constant 0 : i32
    return %c0_i32, %c0_i32_0 : i32, i32
  }
  func.func @transform_17(%arg0: i32) -> (i32, i32) {
    %c0_i32 = arith.constant 0 : i32
    %c0_i32_0 = arith.constant 0 : i32
    %c0_i32_1 = arith.constant 0 : i32
    return %c0_i32, %c0_i32_0 : i32, i32
  }
  func.func @transform_18(%arg0: i32) -> (i32, i32) {
    %c0_i32 = arith.constant 0 : i32
    %c0_i32_0 = arith.constant 0 : i32
    %c0_i32_1 = arith.constant 0 : i32
    return %c0_i32, %c0_i32_0 : i32, i32
  }
  func.func @transform_19(%arg0: i32) -> (i32, i32) {
    %c0_i32 = arith.constant 0 : i32
    %c0_i32_0 = arith.constant 0 : i32
    %c0_i32_1 = arith.constant 0 : i32
    return %c0_i32, %c0_i32_0 : i32, i32
  }
  func.func @transform_20(%arg0: i32) -> (i32, i32) {
    %c0_i32 = arith.constant 0 : i32
    %c0_i32_0 = arith.constant 0 : i32
    %c0_i32_1 = arith.constant 0 : i32
    return %c0_i32, %c0_i32_0 : i32, i32
  }
  func.func @transform_21(%arg0: i32) -> (i32, i32) {
    %c0_i32 = arith.constant 0 : i32
    %c0_i32_0 = arith.constant 0 : i32
    %c0_i32_1 = arith.constant 0 : i32
    return %c0_i32, %c0_i32_0 : i32, i32
  }
  func.func @transform_22(%arg0: i32) -> (i32, i32) {
    %c0_i32 = arith.constant 0 : i32
    %c0_i32_0 = arith.constant 0 : i32
    %c0_i32_1 = arith.constant 0 : i32
    return %c0_i32, %c0_i32_0 : i32, i32
  }
  func.func @transform_23(%arg0: i32) -> (i32, i32) {
    %c0_i32 = arith.constant 0 : i32
    %c0_i32_0 = arith.constant 0 : i32
    %c0_i32_1 = arith.constant 0 : i32
    return %c0_i32, %c0_i32_0 : i32, i32
  }
  func.func @transform_24(%arg0: i32) -> (i32, i32) {
    %c0_i32 = arith.constant 0 : i32
    %c0_i32_0 = arith.constant 0 : i32
    %c0_i32_1 = arith.constant 0 : i32
    return %c0_i32, %c0_i32_0 : i32, i32
  }
  func.func @transform_25(%arg0: i32) -> (i32, i32) {
    %c0_i32 = arith.constant 0 : i32
    %c0_i32_0 = arith.constant 0 : i32
    %c0_i32_1 = arith.constant 0 : i32
    return %c0_i32, %c0_i32_0 : i32, i32
  }
  func.func @transform_26(%arg0: i32) -> (i32, i32) {
    %c0_i32 = arith.constant 0 : i32
    %c0_i32_0 = arith.constant 0 : i32
    %c0_i32_1 = arith.constant 0 : i32
    return %c0_i32, %c0_i32_0 : i32, i32
  }
  func.func @transform_27(%arg0: i32) -> (i32, i32) {
    %c0_i32 = arith.constant 0 : i32
    %c0_i32_0 = arith.constant 0 : i32
    %c0_i32_1 = arith.constant 0 : i32
    return %c0_i32, %c0_i32_0 : i32, i32
  }
  func.func @transform_28(%arg0: i32) -> (i32, i32) {
    %c0_i32 = arith.constant 0 : i32
    %c0_i32_0 = arith.constant 0 : i32
    %c0_i32_1 = arith.constant 0 : i32
    return %c0_i32, %c0_i32_0 : i32, i32
  }
  func.func @transform_29(%arg0: i32) -> (i32, i32) {
    %c0_i32 = arith.constant 0 : i32
    %c0_i32_0 = arith.constant 0 : i32
    %c0_i32_1 = arith.constant 0 : i32
    return %c0_i32, %c0_i32_0 : i32, i32
  }
  func.func @transform_30(%arg0: i32) -> (i32, i32) {
    %c0_i32 = arith.constant 0 : i32
    %c0_i32_0 = arith.constant 0 : i32
    %c0_i32_1 = arith.constant 0 : i32
    return %c0_i32, %c0_i32_0 : i32, i32
  }
  func.func @transform_31(%arg0: i32) -> (i32, i32) {
    %c0_i32 = arith.constant 0 : i32
    %c0_i32_0 = arith.constant 0 : i32
    %c0_i32_1 = arith.constant 0 : i32
    return %c0_i32, %c0_i32_0 : i32, i32
  }
  func.func @transform_32(%arg0: i32) -> (i32, i32) {
    %c0_i32 = arith.constant 0 : i32
    %c0_i32_0 = arith.constant 0 : i32
    %c0_i32_1 = arith.constant 0 : i32
    return %c0_i32, %c0_i32_0 : i32, i32
  }
  func.func @transform_33(%arg0: i32) -> (i32, i32) {
    %c0_i32 = arith.constant 0 : i32
    %c0_i32_0 = arith.constant 0 : i32
    return %arg0, %c0_i32 : i32, i32
  }
  func.func @transform_34(%arg0: i32) -> (i32, i32) {
    %c0_i32 = arith.constant 0 : i32
    %c0_i32_0 = arith.constant 0 : i32
    return %arg0, %c0_i32 : i32, i32
  }
  func.func @transform_35(%arg0: i32) -> (i32, i32) {
    %c0_i32 = arith.constant 0 : i32
    %c0_i32_0 = arith.constant 0 : i32
    return %arg0, %c0_i32 : i32, i32
  }
}

</mosaic_0001>

<llo_original>
// kernel: forward.1
$region0: #{forward.1}
  #allocation0 [shape = 'u32[]', space=smem, size = 0x4, offset = 0x4, fixed_abs, tag = 'smem constant byte address 0x4 - core index']
  #allocation1 [shape = 'u32[144,128]{1,0:T(1,128)}', space=vmem, size = 0x12000, scoped, tag = 'internal scratch']
  #allocation2 [shape = 'f32[8,64]{1,0:T(8,128)}', space=vmem, size = 0x1000, scoped, tag = 'scratch operand']
  #allocation3 [shape = 'f32[8,56]{1,0:T(8,128)}', space=vmem, size = 0x1000, scoped, tag = 'scratch operand']
  #allocation4 [shape = 'f32[8,56]{1,0:T(8,128)}', space=vmem, size = 0x1000, scoped, tag = 'scratch operand']
  %s0 = inlined_call_operand.smem [shape: u32[36], index: -1, kind: input, shape index: {}]
  %s1 = sld [smem:[%s0]]
  %s2 = scalar_lea.smem %s0, 1
  %s3 = sld [smem:[%s2]]
  %s4 = scalar_lea.smem %s0, 2
  %s5 = sld [smem:[%s4]]
  %s6 = scalar_lea.smem %s0, 3
  %s7 = sld [smem:[%s6]]
  %s8 = scalar_lea.smem %s0, 4
  %s9 = sld [smem:[%s8]]
  %s10 = scalar_lea.smem %s0, 5
  %s11 = sld [smem:[%s10]]
  %s12 = scalar_lea.smem %s0, 6
  %s13 = sld [smem:[%s12]]
  %s14 = scalar_lea.smem %s0, 7
  %s15 = sld [smem:[%s14]]
  %s16 = scalar_lea.smem %s0, 8
  %s17 = sld [smem:[%s16]]
  %s18 = scalar_lea.smem %s0, 9
  %s19 = sld [smem:[%s18]]
  %s20 = scalar_lea.smem %s0, 10
  %s21 = sld [smem:[%s20]]
  %s22 = scalar_lea.smem %s0, 11
  %s23 = sld [smem:[%s22]]
  %s24 = scalar_lea.smem %s0, 12
  %s25 = sld [smem:[%s24]]
  %s26 = scalar_lea.smem %s0, 13
  %s27 = sld [smem:[%s26]]
  %s28 = scalar_lea.smem %s0, 14
  %s29 = sld [smem:[%s28]]
  %s30 = scalar_lea.smem %s0, 15
  %s31 = sld [smem:[%s30]]
  %s32 = scalar_lea.smem %s0, 16
  %s33 = sld [smem:[%s32]]
  %s34 = scalar_lea.smem %s0, 17
  %s35 = sld [smem:[%s34]]
  %s36 = scalar_lea.smem %s0, 18
  %s37 = sld [smem:[%s36]]
  %s38 = scalar_lea.smem %s0, 19
  %s39 = sld [smem:[%s38]]
  %s40 = scalar_lea.smem %s0, 20
  %s41 = sld [smem:[%s40]]
  %s42 = scalar_lea.smem %s0, 21
  %s43 = sld [smem:[%s42]]
  %s44 = scalar_lea.smem %s0, 22
  %s45 = sld [smem:[%s44]]
  %s46 = scalar_lea.smem %s0, 23
  %s47 = sld [smem:[%s46]]
  %s48 = scalar_lea.smem %s0, 24
  %s49 = sld [smem:[%s48]]
  %s50 = scalar_lea.smem %s0, 25
  %s51 = sld [smem:[%s50]]
  %s52 = scalar_lea.smem %s0, 26
  %s53 = sld [smem:[%s52]]
  %s54 = scalar_lea.smem %s0, 27
  %s55 = sld [smem:[%s54]]
  %s56 = scalar_lea.smem %s0, 28
  %s57 = sld [smem:[%s56]]
  %s58 = scalar_lea.smem %s0, 29
  %s59 = sld [smem:[%s58]]
  %s60 = scalar_lea.smem %s0, 30
  %s61 = sld [smem:[%s60]]
  %s62 = scalar_lea.smem %s0, 31
  %s63 = sld [smem:[%s62]]
  %s64 = scalar_lea.smem %s0, 32
  %s65 = sld [smem:[%s64]]
  %s66 = scalar_lea.smem %s0, 33
  %s67 = sld [smem:[%s66]]
  %s68 = scalar_lea.smem %s0, 34
  %s69 = sld [smem:[%s68]]
  %s70 = scalar_lea.smem %s0, 35
  %s71 = sld [smem:[%s70]]
  %72 = xla_tuple %s67, %s69, %s71
  %s73 = sld [smem:[#allocation0]]
  $region158: #{forward.1} parent=0
    _
  %s75 = ssub.s32 1, %s73
  %s76 = scalar_select 0, %s75, %s73
  $region1: #{forward.1} parent=0
    #allocation5 [shape = 'u8[4096]{0}', space=vmem, size = 0x1000, scoped, tag = 'output window, operand 0, single buffered']
    #allocation6 [shape = 's32[1]{0}', space=sflag, size = 0x4, scoped, tag = 'scoped memory for forward.1']
    #allocation7 [shape = 'u8[4096]{0}', space=vmem, size = 0x1000, scoped, tag = 'output window, operand 1, single buffered']
    #allocation8 [shape = 's32[1]{0}', space=sflag, size = 0x4, scoped, tag = 'scoped memory for forward.1']
    #allocation9 [shape = 'u8[4096]{0}', space=vmem, size = 0x1000, scoped, tag = 'output window, operand 2, single buffered']
    %77 = vsyncpa [#allocation6], 0
    %78 = vsyncpa [#allocation8], 0
    // Predicated region
    $region2: #{forward.1} parent=1 // pred_check
      _
    $region3: #{forward.1} parent=1 // pred_check_branch
      %80 = sbr.rel (0) target = $region5
    $region4: #{forward.1} parent=1 // pred_region
      _
    $region5: #{forward.1} parent=1 // pred_fallthru
      _
    // Predicated region
    $region6: #{forward.1} parent=1 // pred_check
      _
    $region7: #{forward.1} parent=1 // pred_check_branch
      %82 = sbr.rel (0) target = $region9
    $region8: #{forward.1} parent=1 // pred_region
      _
    $region9: #{forward.1} parent=1 // pred_fallthru
      _
    // Predicated region
    $region10: #{forward.1} parent=1 // pred_check
      _
    $region11: #{forward.1} parent=1 // pred_check_branch
      %84 = sbr.rel (0) target = $region13
    $region12: #{forward.1} parent=1 // pred_region
      _
    $region13: #{forward.1} parent=1 // pred_fallthru
      _
    // Predicated region
    $region14: #{forward.1} parent=1 // pred_check
      _
    $region15: #{forward.1} parent=1 // pred_check_branch
      %86 = sbr.rel (0) target = $region17
    $region16: #{forward.1} parent=1 // pred_region
      _
    $region17: #{forward.1} parent=1 // pred_fallthru
      _
    // Predicated region
    $region18: #{forward.1} parent=1 // pred_check
      _
    $region19: #{forward.1} parent=1 // pred_check_branch
      %88 = sbr.rel (0) target = $region21
    $region20: #{forward.1} parent=1 // pred_region
      _
    $region21: #{forward.1} parent=1 // pred_fallthru
      _
    // Predicated region
    $region22: #{forward.1} parent=1 // pred_check
      _
    $region23: #{forward.1} parent=1 // pred_check_branch
      %90 = sbr.rel (0) target = $region25
    $region24: #{forward.1} parent=1 // pred_region
      _
    $region25: #{forward.1} parent=1 // pred_fallthru
      _
    // Predicated region
    $region26: #{forward.1} parent=1 // pred_check
      _
    $region27: #{forward.1} parent=1 // pred_check_branch
      %92 = sbr.rel (0) target = $region29
    $region28: #{forward.1} parent=1 // pred_region
      _
    $region29: #{forward.1} parent=1 // pred_fallthru
      _
    // Predicated region
    $region30: #{forward.1} parent=1 // pred_check
      _
    $region31: #{forward.1} parent=1 // pred_check_branch
      %94 = sbr.rel (0) target = $region33
    $region32: #{forward.1} parent=1 // pred_region
      _
    $region33: #{forward.1} parent=1 // pred_fallthru
      _
    // Predicated region
    $region34: #{forward.1} parent=1 // pred_check
      _
    $region35: #{forward.1} parent=1 // pred_check_branch
      %96 = sbr.rel (0) target = $region37
    $region36: #{forward.1} parent=1 // pred_region
      _
    $region37: #{forward.1} parent=1 // pred_fallthru
      _
    // Predicated region
    $region38: #{forward.1} parent=1 // pred_check
      _
    $region39: #{forward.1} parent=1 // pred_check_branch
      %98 = sbr.rel (0) target = $region41
    $region40: #{forward.1} parent=1 // pred_region
      _
    $region41: #{forward.1} parent=1 // pred_fallthru
      _
    // Predicated region
    $region42: #{forward.1} parent=1 // pred_check
      _
    $region43: #{forward.1} parent=1 // pred_check_branch
      %100 = sbr.rel (0) target = $region45
    $region44: #{forward.1} parent=1 // pred_region
      _
    $region45: #{forward.1} parent=1 // pred_fallthru
      _
    // Predicated region
    $region46: #{forward.1} parent=1 // pred_check
      _
    $region47: #{forward.1} parent=1 // pred_check_branch
      %102 = sbr.rel (0) target = $region49
    $region48: #{forward.1} parent=1 // pred_region
      _
    $region49: #{forward.1} parent=1 // pred_fallthru
      _
    // Predicated region
    $region50: #{forward.1} parent=1 // pred_check
      _
    $region51: #{forward.1} parent=1 // pred_check_branch
      %104 = sbr.rel (0) target = $region53
    $region52: #{forward.1} parent=1 // pred_region
      _
    $region53: #{forward.1} parent=1 // pred_fallthru
      _
    // Predicated region
    $region54: #{forward.1} parent=1 // pred_check
      _
    $region55: #{forward.1} parent=1 // pred_check_branch
      %106 = sbr.rel (0) target = $region57
    $region56: #{forward.1} parent=1 // pred_region
      _
    $region57: #{forward.1} parent=1 // pred_fallthru
      _
    // Predicated region
    $region58: #{forward.1} parent=1 // pred_check
      _
    $region59: #{forward.1} parent=1 // pred_check_branch
      %108 = sbr.rel (0) target = $region61
    $region60: #{forward.1} parent=1 // pred_region
      _
    $region61: #{forward.1} parent=1 // pred_fallthru
      _
    // Predicated region
    $region62: #{forward.1} parent=1 // pred_check
      _
    $region63: #{forward.1} parent=1 // pred_check_branch
      %110 = sbr.rel (0) target = $region65
    $region64: #{forward.1} parent=1 // pred_region
      _
    $region65: #{forward.1} parent=1 // pred_fallthru
      _
    // Predicated region
    $region66: #{forward.1} parent=1 // pred_check
      _
    $region67: #{forward.1} parent=1 // pred_check_branch
      %112 = sbr.rel (0) target = $region69
    $region68: #{forward.1} parent=1 // pred_region
      _
    $region69: #{forward.1} parent=1 // pred_fallthru
      _
    // Predicated region
    $region70: #{forward.1} parent=1 // pred_check
      _
    $region71: #{forward.1} parent=1 // pred_check_branch
      %114 = sbr.rel (0) target = $region73
    $region72: #{forward.1} parent=1 // pred_region
      _
    $region73: #{forward.1} parent=1 // pred_fallthru
      _
    // Predicated region
    $region74: #{forward.1} parent=1 // pred_check
      _
    $region75: #{forward.1} parent=1 // pred_check_branch
      %116 = sbr.rel (0) target = $region77
    $region76: #{forward.1} parent=1 // pred_region
      _
    $region77: #{forward.1} parent=1 // pred_fallthru
      _
    // Predicated region
    $region78: #{forward.1} parent=1 // pred_check
      _
    $region79: #{forward.1} parent=1 // pred_check_branch
      %118 = sbr.rel (0) target = $region81
    $region80: #{forward.1} parent=1 // pred_region
      _
    $region81: #{forward.1} parent=1 // pred_fallthru
      _
    // Predicated region
    $region82: #{forward.1} parent=1 // pred_check
      _
    $region83: #{forward.1} parent=1 // pred_check_branch
      %120 = sbr.rel (0) target = $region85
    $region84: #{forward.1} parent=1 // pred_region
      _
    $region85: #{forward.1} parent=1 // pred_fallthru
      _
    // Predicated region
    $region86: #{forward.1} parent=1 // pred_check
      _
    $region87: #{forward.1} parent=1 // pred_check_branch
      %122 = sbr.rel (0) target = $region89
    $region88: #{forward.1} parent=1 // pred_region
      _
    $region89: #{forward.1} parent=1 // pred_fallthru
      _
    // Predicated region
    $region90: #{forward.1} parent=1 // pred_check
      _
    $region91: #{forward.1} parent=1 // pred_check_branch
      %124 = sbr.rel (0) target = $region93
    $region92: #{forward.1} parent=1 // pred_region
      _
    $region93: #{forward.1} parent=1 // pred_fallthru
      _
    // Predicated region
    $region94: #{forward.1} parent=1 // pred_check
      _
    $region95: #{forward.1} parent=1 // pred_check_branch
      %126 = sbr.rel (0) target = $region97
    $region96: #{forward.1} parent=1 // pred_region
      _
    $region97: #{forward.1} parent=1 // pred_fallthru
      _
    // Predicated region
    $region98: #{forward.1} parent=1 // pred_check
      _
    $region99: #{forward.1} parent=1 // pred_check_branch
      %128 = sbr.rel (0) target = $region101
    $region100: #{forward.1} parent=1 // pred_region
      _
    $region101: #{forward.1} parent=1 // pred_fallthru
      _
    // Predicated region
    $region102: #{forward.1} parent=1 // pred_check
      _
    $region103: #{forward.1} parent=1 // pred_check_branch
      %130 = sbr.rel (0) target = $region105
    $region104: #{forward.1} parent=1 // pred_region
      _
    $region105: #{forward.1} parent=1 // pred_fallthru
      _
    // Predicated region
    $region106: #{forward.1} parent=1 // pred_check
      _
    $region107: #{forward.1} parent=1 // pred_check_branch
      %132 = sbr.rel (0) target = $region109
    $region108: #{forward.1} parent=1 // pred_region
      _
    $region109: #{forward.1} parent=1 // pred_fallthru
      _
    // Predicated region
    $region110: #{forward.1} parent=1 // pred_check
      _
    $region111: #{forward.1} parent=1 // pred_check_branch
      %134 = sbr.rel (0) target = $region113
    $region112: #{forward.1} parent=1 // pred_region
      _
    $region113: #{forward.1} parent=1 // pred_fallthru
      _
    // Predicated region
    $region114: #{forward.1} parent=1 // pred_check
      _
    $region115: #{forward.1} parent=1 // pred_check_branch
      %136 = sbr.rel (0) target = $region117
    $region116: #{forward.1} parent=1 // pred_region
      _
    $region117: #{forward.1} parent=1 // pred_fallthru
      _
    // Predicated region
    $region118: #{forward.1} parent=1 // pred_check
      _
    $region119: #{forward.1} parent=1 // pred_check_branch
      %138 = sbr.rel (0) target = $region121
    $region120: #{forward.1} parent=1 // pred_region
      _
    $region121: #{forward.1} parent=1 // pred_fallthru
      _
    // Predicated region
    $region122: #{forward.1} parent=1 // pred_check
      _
    $region123: #{forward.1} parent=1 // pred_check_branch
      %140 = sbr.rel (0) target = $region125
    $region124: #{forward.1} parent=1 // pred_region
      _
    $region125: #{forward.1} parent=1 // pred_fallthru
      _
    // Predicated region
    $region126: #{forward.1} parent=1 // pred_check
      _
    $region127: #{forward.1} parent=1 // pred_check_branch
      %142 = sbr.rel (0) target = $region129
    $region128: #{forward.1} parent=1 // pred_region
      _
    $region129: #{forward.1} parent=1 // pred_fallthru
      _
    // Predicated region
    $region130: #{forward.1} parent=1 // pred_check
      _
    $region131: #{forward.1} parent=1 // pred_check_branch
      %144 = sbr.rel (0) target = $region133
    $region132: #{forward.1} parent=1 // pred_region
      _
    $region133: #{forward.1} parent=1 // pred_fallthru
      _
    %v145 = vld [vmem:[%s1] sm:$0xff]
    %v146 = vld [vmem:[%s3] sm:$0xff]
    %v147 = vld [vmem:[%s5] sm:$0xff]
    %v148 = vld [vmem:[%s7] sm:$0xff]
    %vm149 = vcmask 64512
    %v151 = vsel %vm149, %v146, 0
    %153 = vmatprep.subr.mxu0 0.0
    %154 = vmatpush1.msra.mxu0 %v148
    %155 = vmatprep.subr.mxu0 0.0
    %156 = vmatpush1.msra.mxu0 0.0
    %157 = vmatprep.subr.mxu0 0.0
    %158 = vmatpush1.msra.mxu0 0.0
    %159 = vmatprep.subr.mxu0 0.0
    %160 = vmatpush1.msra.mxu0 0.0
    %161 = vmatprep.subr.mxu0 0.0
    %162 = vmatpush1.msra.mxu0 0.0
    %163 = vmatprep.subr.mxu0 0.0
    %164 = vmatpush1.msra.mxu0 0.0
    %165 = vmatprep.subr.mxu0 0.0
    %166 = vmatpush1.msra.mxu0 0.0
    %167 = vmatprep.subr.mxu0 0.0
    %168 = vmatpush1.msra.mxu0 0.0
    %169 = vmatprep.subr.mxu0 0.0
    %170 = vmatpush1.msra.mxu0 0.0
    %171 = vmatprep.subr.mxu0 0.0
    %172 = vmatpush1.msra.mxu0 0.0
    %173 = vmatprep.subr.mxu0 0.0
    %174 = vmatpush1.msra.mxu0 0.0
    %175 = vmatprep.subr.mxu0 0.0
    %176 = vmatpush1.msra.mxu0 0.0
    %177 = vmatprep.subr.mxu0 0.0
    %178 = vmatpush1.msra.mxu0 0.0
    %179 = vmatprep.subr.mxu0 0.0
    %180 = vmatpush1.msra.mxu0 0.0
    %181 = vmatprep.subr.mxu0 0.0
    %182 = vmatpush1.msra.mxu0 0.0
    %183 = vmatprep.subr.mxu0 0.0
    %184 = vmatpush1.msra.mxu0 0.0
    %185 = vmatprep.subr.mxu0 0.0
    %186 = vmatpush1.msra.mxu0 0.0
    %187 = vmatprep.subr.mxu0 0.0
    %188 = vmatpush1.msra.mxu0 0.0
    %189 = vmatprep.subr.mxu0 0.0
    %190 = vmatpush1.msra.mxu0 0.0
    %191 = vmatprep.subr.mxu0 0.0
    %192 = vmatpush1.msra.mxu0 0.0
    %193 = vmatprep.subr.mxu0 0.0
    %194 = vmatpush1.msra.mxu0 0.0
    %195 = vmatprep.subr.mxu0 0.0
    %196 = vmatpush1.msra.mxu0 0.0
    %197 = vmatprep.subr.mxu0 0.0
    %198 = vmatpush1.msra.mxu0 0.0
    %199 = vmatprep.subr.mxu0 0.0
    %200 = vmatpush1.msra.mxu0 0.0
    %201 = vmatprep.subr.mxu0 0.0
    %202 = vmatpush1.msra.mxu0 0.0
    %203 = vmatprep.subr.mxu0 0.0
    %204 = vmatpush1.msra.mxu0 0.0
    %205 = vmatprep.subr.mxu0 0.0
    %206 = vmatpush1.msra.mxu0 0.0
    %207 = vmatprep.subr.mxu0 0.0
    %208 = vmatpush1.msra.mxu0 0.0
    %209 = vmatprep.subr.mxu0 0.0
    %210 = vmatpush1.msra.mxu0 0.0
    %211 = vmatprep.subr.mxu0 0.0
    %212 = vmatpush1.msra.mxu0 0.0
    %213 = vmatprep.subr.mxu0 0.0
    %214 = vmatpush1.msra.mxu0 0.0
    %215 = vmatprep.subr.mxu0 0.0
    %216 = vmatpush1.msra.mxu0 0.0
    %217 = vmatprep.mubr.f32.mxu0 0.0
    %218 = vmatmul.mubr.f32.gmra.mrb[0].mxu0 %v151
    %v219 = vpop.f32.mrb[0].mxu0
    %v220 = vadd.f32 0.0, %v219
    %v221 = vpop.f32.mrb[0].mxu0
    %222 = vdwg.mxu0
    %v224 = vsel %vm149, %v145, 0
    %226 = vmatprep.subr.mxu0 0.0
    %227 = vmatpush1.msra.mxu0 %v147
    %228 = vmatprep.subr.mxu0 0.0
    %229 = vmatpush1.msra.mxu0 0.0
    %230 = vmatprep.subr.mxu0 0.0
    %231 = vmatpush1.msra.mxu0 0.0
    %232 = vmatprep.subr.mxu0 0.0
    %233 = vmatpush1.msra.mxu0 0.0
    %234 = vmatprep.subr.mxu0 0.0
    %235 = vmatpush1.msra.mxu0 0.0
    %236 = vmatprep.subr.mxu0 0.0
    %237 = vmatpush1.msra.mxu0 0.0
    %238 = vmatprep.subr.mxu0 0.0
    %239 = vmatpush1.msra.mxu0 0.0
    %240 = vmatprep.subr.mxu0 0.0
    %241 = vmatpush1.msra.mxu0 0.0
    %242 = vmatprep.subr.mxu0 0.0
    %243 = vmatpush1.msra.mxu0 0.0
    %244 = vmatprep.subr.mxu0 0.0
    %245 = vmatpush1.msra.mxu0 0.0
    %246 = vmatprep.subr.mxu0 0.0
    %247 = vmatpush1.msra.mxu0 0.0
    %248 = vmatprep.subr.mxu0 0.0
    %249 = vmatpush1.msra.mxu0 0.0
    %250 = vmatprep.subr.mxu0 0.0
    %251 = vmatpush1.msra.mxu0 0.0
    %252 = vmatprep.subr.mxu0 0.0
    %253 = vmatpush1.msra.mxu0 0.0
    %254 = vmatprep.subr.mxu0 0.0
    %255 = vmatpush1.msra.mxu0 0.0
    %256 = vmatprep.subr.mxu0 0.0
    %257 = vmatpush1.msra.mxu0 0.0
    %258 = vmatprep.subr.mxu0 0.0
    %259 = vmatpush1.msra.mxu0 0.0
    %260 = vmatprep.subr.mxu0 0.0
    %261 = vmatpush1.msra.mxu0 0.0
    %262 = vmatprep.subr.mxu0 0.0
    %263 = vmatpush1.msra.mxu0 0.0
    %264 = vmatprep.subr.mxu0 0.0
    %265 = vmatpush1.msra.mxu0 0.0
    %266 = vmatprep.subr.mxu0 0.0
    %267 = vmatpush1.msra.mxu0 0.0
    %268 = vmatprep.subr.mxu0 0.0
    %269 = vmatpush1.msra.mxu0 0.0
    %270 = vmatprep.subr.mxu0 0.0
    %271 = vmatpush1.msra.mxu0 0.0
    %272 = vmatprep.subr.mxu0 0.0
    %273 = vmatpush1.msra.mxu0 0.0
    %274 = vmatprep.subr.mxu0 0.0
    %275 = vmatpush1.msra.mxu0 0.0
    %276 = vmatprep.subr.mxu0 0.0
    %277 = vmatpush1.msra.mxu0 0.0
    %278 = vmatprep.subr.mxu0 0.0
    %279 = vmatpush1.msra.mxu0 0.0
    %280 = vmatprep.subr.mxu0 0.0
    %281 = vmatpush1.msra.mxu0 0.0
    %282 = vmatprep.subr.mxu0 0.0
    %283 = vmatpush1.msra.mxu0 0.0
    %284 = vmatprep.subr.mxu0 0.0
    %285 = vmatpush1.msra.mxu0 0.0
    %286 = vmatprep.subr.mxu0 0.0
    %287 = vmatpush1.msra.mxu0 0.0
    %288 = vmatprep.subr.mxu0 0.0
    %289 = vmatpush1.msra.mxu0 0.0
    %290 = vmatprep.mubr.f32.mxu0 0.0
    %291 = vmatmul.mubr.f32.gmra.mrb[0].mxu0 %v224
    %v292 = vpop.f32.mrb[0].mxu0
    %v293 = vadd.f32 %v220, %v292
    %v294 = vpop.f32.mrb[0].mxu0
    %295 = vdwg.mxu0
    %v296 = vld [vmem:[%s9] sm:$0x1]
    %v298 = vlaneseq
    %v299 = vshrl.u32 %v298, 7
    %v300 = vsub.s32 0, %v299
    %v301 = vrot.slane %v296, %v300
    %v303 = vadd.f32 %v293, %v301
    %v304 = vld [vmem:[%s11] sm:$0x1]
    %v305 = vld [vmem:[%s13] sm:$0x1]
    %vm306 = vcmask 261120
    %v307 = vsel %vm306, %v303, 0.0
    %308 = vadd.xlane.f32.xlu0 %v307
    %v309 = vpop.xlane.xlu0 %308
    %v310 = vrcp.pop 32.0
    %v311 = vmul.f32 %v309, %v310
    %v312 = vsub.f32 %v303, %v311
    %v313 = vmul.f32 %v312, %v312
    %v314 = vsel %vm306, %v313, 0.0
    %315 = vadd.xlane.f32.xlu0 %v314
    %v316 = vpop.xlane.xlu0 %315
    %v317 = vmul.f32 %v316, %v310
    %v318 = vadd.f32 %v317, 1e-05
    %v319 = vrsqrt.pop %v318
    %v320 = vmul.f32 %v312, %v319
    %v322 = vlaneseq
    %v323 = vshrl.u32 %v322, 7
    %v324 = vsub.s32 0, %v323
    %v325 = vrot.slane %v304, %v324
    %v327 = vmul.f32 %v320, %v325
    %v329 = vlaneseq
    %v330 = vshrl.u32 %v329, 7
    %v331 = vsub.s32 0, %v330
    %v332 = vrot.slane %v305, %v331
    %v334 = vadd.f32 %v327, %v332
    %v335 = vmax.f32 %v334, 0.0
    %v336 = vld [vmem:[%s15] sm:$0xff]
    %v337 = vld [vmem:[%s15 + $0x8] sm:$0xff]
    %v338 = vld [vmem:[%s15 + $0x10] sm:$0xff]
    %v339 = vld [vmem:[%s15 + $0x18] sm:$0xff]
    %v340 = vld [vmem:[%s17] sm:$0x1]
    %v342 = vlaneseq
    %v343 = vshrl.u32 %v342, 7
    %v344 = vsub.s32 0, %v343
    %v345 = vrot.slane %v340, %v344
    %v348 = vsel %vm306, %v335, 0
    %350 = vmatprep.subr.mxu0 0.0
    %351 = vmatpush1.msra.mxu0 %v336
    %352 = vmatprep.subr.mxu0 0.0
    %353 = vmatpush1.msra.mxu0 %v337
    %354 = vmatprep.subr.mxu0 0.0
    %355 = vmatpush1.msra.mxu0 %v338
    %356 = vmatprep.subr.mxu0 0.0
    %357 = vmatpush1.msra.mxu0 %v339
    %358 = vmatprep.subr.mxu0 0.0
    %359 = vmatpush1.msra.mxu0 0.0
    %360 = vmatprep.subr.mxu0 0.0
    %361 = vmatpush1.msra.mxu0 0.0
    %362 = vmatprep.subr.mxu0 0.0
    %363 = vmatpush1.msra.mxu0 0.0
    %364 = vmatprep.subr.mxu0 0.0
    %365 = vmatpush1.msra.mxu0 0.0
    %366 = vmatprep.subr.mxu0 0.0
    %367 = vmatpush1.msra.mxu0 0.0
    %368 = vmatprep.subr.mxu0 0.0
    %369 = vmatpush1.msra.mxu0 0.0
    %370 = vmatprep.subr.mxu0 0.0
    %371 = vmatpush1.msra.mxu0 0.0
    %372 = vmatprep.subr.mxu0 0.0
    %373 = vmatpush1.msra.mxu0 0.0
    %374 = vmatprep.subr.mxu0 0.0
    %375 = vmatpush1.msra.mxu0 0.0
    %376 = vmatprep.subr.mxu0 0.0
    %377 = vmatpush1.msra.mxu0 0.0
    %378 = vmatprep.subr.mxu0 0.0
    %379 = vmatpush1.msra.mxu0 0.0
    %380 = vmatprep.subr.mxu0 0.0
    %381 = vmatpush1.msra.mxu0 0.0
    %382 = vmatprep.subr.mxu0 0.0
    %383 = vmatpush1.msra.mxu0 0.0
    %384 = vmatprep.subr.mxu0 0.0
    %385 = vmatpush1.msra.mxu0 0.0
    %386 = vmatprep.subr.mxu0 0.0
    %387 = vmatpush1.msra.mxu0 0.0
    %388 = vmatprep.subr.mxu0 0.0
    %389 = vmatpush1.msra.mxu0 0.0
    %390 = vmatprep.subr.mxu0 0.0
    %391 = vmatpush1.msra.mxu0 0.0
    %392 = vmatprep.subr.mxu0 0.0
    %393 = vmatpush1.msra.mxu0 0.0
    %394 = vmatprep.subr.mxu0 0.0
    %395 = vmatpush1.msra.mxu0 0.0
    %396 = vmatprep.subr.mxu0 0.0
    %397 = vmatpush1.msra.mxu0 0.0
    %398 = vmatprep.subr.mxu0 0.0
    %399 = vmatpush1.msra.mxu0 0.0
    %400 = vmatprep.subr.mxu0 0.0
    %401 = vmatpush1.msra.mxu0 0.0
    %402 = vmatprep.subr.mxu0 0.0
    %403 = vmatpush1.msra.mxu0 0.0
    %404 = vmatprep.subr.mxu0 0.0
    %405 = vmatpush1.msra.mxu0 0.0
    %406 = vmatprep.subr.mxu0 0.0
    %407 = vmatpush1.msra.mxu0 0.0
    %408 = vmatprep.subr.mxu0 0.0
    %409 = vmatpush1.msra.mxu0 0.0
    %410 = vmatprep.subr.mxu0 0.0
    %411 = vmatpush1.msra.mxu0 0.0
    %412 = vmatprep.subr.mxu0 0.0
    %413 = vmatpush1.msra.mxu0 0.0
    %414 = vmatprep.mubr.f32.mxu0 0.0
    %415 = vmatmul.mubr.f32.gmra.mrb[0].mxu0 %v348
    %v416 = vpop.f32.mrb[0].mxu0
    %v417 = vadd.f32 %v345, %v416
    %v418 = vpop.f32.mrb[0].mxu0
    %419 = vdwg.mxu0
    %v420 = vmax.f32 %v417, 0.0
    %v421 = vld [vmem:[%s19] sm:$0xff]
    %v422 = vld [vmem:[%s19 + $0x8] sm:$0xff]
    %v423 = vld [vmem:[%s19 + $0x10] sm:$0xff]
    %v424 = vld [vmem:[%s19 + $0x18] sm:$0xff]
    %v425 = vld [vmem:[%s19 + $0x20] sm:$0xff]
    %v426 = vld [vmem:[%s19 + $0x28] sm:$0xff]
    %v427 = vld [vmem:[%s19 + $0x30] sm:$0xff]
    %v428 = vld [vmem:[%s19 + $0x38] sm:$0xff]
    %v429 = vld [vmem:[%s21] sm:$0x1]
    %v431 = vlaneseq
    %v432 = vshrl.u32 %v431, 7
    %v433 = vsub.s32 0, %v432
    %v434 = vrot.slane %v429, %v433
    %vm436 = vcmask 523264
    %v438 = vsel %vm436, %v420, 0
    %440 = vmatprep.subr.mxu0 0.0
    %441 = vmatpush1.msra.mxu0 %v421
    %442 = vmatprep.subr.mxu0 0.0
    %443 = vmatpush1.msra.mxu0 %v422
    %444 = vmatprep.subr.mxu0 0.0
    %445 = vmatpush1.msra.mxu0 %v423
    %446 = vmatprep.subr.mxu0 0.0
    %447 = vmatpush1.msra.mxu0 %v424
    %448 = vmatprep.subr.mxu0 0.0
    %449 = vmatpush1.msra.mxu0 %v425
    %450 = vmatprep.subr.mxu0 0.0
    %451 = vmatpush1.msra.mxu0 %v426
    %452 = vmatprep.subr.mxu0 0.0
    %453 = vmatpush1.msra.mxu0 %v427
    %454 = vmatprep.subr.mxu0 0.0
    %455 = vmatpush1.msra.mxu0 %v428
    %456 = vmatprep.subr.mxu0 0.0
    %457 = vmatpush1.msra.mxu0 0.0
    %458 = vmatprep.subr.mxu0 0.0
    %459 = vmatpush1.msra.mxu0 0.0
    %460 = vmatprep.subr.mxu0 0.0
    %461 = vmatpush1.msra.mxu0 0.0
    %462 = vmatprep.subr.mxu0 0.0
    %463 = vmatpush1.msra.mxu0 0.0
    %464 = vmatprep.subr.mxu0 0.0
    %465 = vmatpush1.msra.mxu0 0.0
    %466 = vmatprep.subr.mxu0 0.0
    %467 = vmatpush1.msra.mxu0 0.0
    %468 = vmatprep.subr.mxu0 0.0
    %469 = vmatpush1.msra.mxu0 0.0
    %470 = vmatprep.subr.mxu0 0.0
    %471 = vmatpush1.msra.mxu0 0.0
    %472 = vmatprep.subr.mxu0 0.0
    %473 = vmatpush1.msra.mxu0 0.0
    %474 = vmatprep.subr.mxu0 0.0
    %475 = vmatpush1.msra.mxu0 0.0
    %476 = vmatprep.subr.mxu0 0.0
    %477 = vmatpush1.msra.mxu0 0.0
    %478 = vmatprep.subr.mxu0 0.0
    %479 = vmatpush1.msra.mxu0 0.0
    %480 = vmatprep.subr.mxu0 0.0
    %481 = vmatpush1.msra.mxu0 0.0
    %482 = vmatprep.subr.mxu0 0.0
    %483 = vmatpush1.msra.mxu0 0.0
    %484 = vmatprep.subr.mxu0 0.0
    %485 = vmatpush1.msra.mxu0 0.0
    %486 = vmatprep.subr.mxu0 0.0
    %487 = vmatpush1.msra.mxu0 0.0
    %488 = vmatprep.subr.mxu0 0.0
    %489 = vmatpush1.msra.mxu0 0.0
    %490 = vmatprep.subr.mxu0 0.0
    %491 = vmatpush1.msra.mxu0 0.0
    %492 = vmatprep.subr.mxu0 0.0
    %493 = vmatpush1.msra.mxu0 0.0
    %494 = vmatprep.subr.mxu0 0.0
    %495 = vmatpush1.msra.mxu0 0.0
    %496 = vmatprep.subr.mxu0 0.0
    %497 = vmatpush1.msra.mxu0 0.0
    %498 = vmatprep.subr.mxu0 0.0
    %499 = vmatpush1.msra.mxu0 0.0
    %500 = vmatprep.subr.mxu0 0.0
    %501 = vmatpush1.msra.mxu0 0.0
    %502 = vmatprep.subr.mxu0 0.0
    %503 = vmatpush1.msra.mxu0 0.0
    %504 = vmatprep.mubr.f32.mxu0 0.0
    %505 = vmatmul.mubr.f32.gmra.mrb[0].mxu0 %v438
    %v506 = vpop.f32.mrb[0].mxu0
    %v507 = vadd.f32 %v434, %v506
    %v508 = vpop.f32.mrb[0].mxu0
    %509 = vdwg.mxu0
    %v510 = vadd.f32 %v335, %v507
    %511 = vst.msk [vmem:[#allocation2] sm:$0xff] %vm306, %v510
    %512 = vrot.lane.b32.xlu0 %v145, 32
    %v513 = vpop.permute.xlu0 %512
    %vm515 = vcmask 326912
    %516 = vst.msk [vmem:[#allocation2] sm:$0xff] %vm515, %v513
    %517 = vrot.lane.b32.xlu0 %v146, 40
    %v518 = vpop.permute.xlu0 %517
    %vm520 = vcmask 392512
    %521 = vst.msk [vmem:[#allocation2] sm:$0xff] %vm520, %v518
    %v522 = vld [vmem:[#allocation2] sm:$0xff]
    %v523 = vld [vmem:[%s23] sm:$0x1]
    %v524 = vld [vmem:[%s25] sm:$0x1]
    %vm525 = vcmask 392192
    %v526 = vsel %vm525, %v522, 0.0
    %527 = vadd.xlane.f32.xlu0 %v526
    %v528 = vpop.xlane.xlu0 %527
    %v529 = vrcp.pop 48.0
    %v530 = vmul.f32 %v528, %v529
    %v531 = vsub.f32 %v522, %v530
    %v532 = vmul.f32 %v531, %v531
    %v533 = vsel %vm525, %v532, 0.0
    %534 = vadd.xlane.f32.xlu0 %v533
    %v535 = vpop.xlane.xlu0 %534
    %v536 = vmul.f32 %v535, %v529
    %v537 = vadd.f32 %v536, 1e-05
    %v538 = vrsqrt.pop %v537
    %v539 = vmul.f32 %v531, %v538
    %v541 = vlaneseq
    %v542 = vshrl.u32 %v541, 7
    %v543 = vsub.s32 0, %v542
    %v544 = vrot.slane %v523, %v543
    %v546 = vmul.f32 %v539, %v544
    %v548 = vlaneseq
    %v549 = vshrl.u32 %v548, 7
    %v550 = vsub.s32 0, %v549
    %v551 = vrot.slane %v524, %v550
    %v553 = vadd.f32 %v546, %v551
    %v554 = vld [vmem:[%s27] sm:$0xff]
    %v555 = vld [vmem:[%s27 + $0x8] sm:$0xff]
    %v556 = vld [vmem:[%s27 + $0x10] sm:$0xff]
    %v557 = vld [vmem:[%s27 + $0x18] sm:$0xff]
    %v558 = vld [vmem:[%s27 + $0x20] sm:$0xff]
    %v559 = vld [vmem:[%s27 + $0x28] sm:$0xff]
    %v560 = vld [vmem:[%s29] sm:$0x1]
    %v562 = vlaneseq
    %v563 = vshrl.u32 %v562, 7
    %v564 = vsub.s32 0, %v563
    %v565 = vrot.slane %v560, %v564
    %v568 = vsel %vm525, %v553, 0
    %570 = vmatprep.subr.mxu0 0.0
    %571 = vmatpush1.msra.mxu0 %v554
    %572 = vmatprep.subr.mxu0 0.0
    %573 = vmatpush1.msra.mxu0 %v555
    %574 = vmatprep.subr.mxu0 0.0
    %575 = vmatpush1.msra.mxu0 %v556
    %576 = vmatprep.subr.mxu0 0.0
    %577 = vmatpush1.msra.mxu0 %v557
    %578 = vmatprep.subr.mxu0 0.0
    %579 = vmatpush1.msra.mxu0 %v558
    %580 = vmatprep.subr.mxu0 0.0
    %581 = vmatpush1.msra.mxu0 %v559
    %582 = vmatprep.subr.mxu0 0.0
    %583 = vmatpush1.msra.mxu0 0.0
    %584 = vmatprep.subr.mxu0 0.0
    %585 = vmatpush1.msra.mxu0 0.0
    %586 = vmatprep.subr.mxu0 0.0
    %587 = vmatpush1.msra.mxu0 0.0
    %588 = vmatprep.subr.mxu0 0.0
    %589 = vmatpush1.msra.mxu0 0.0
    %590 = vmatprep.subr.mxu0 0.0
    %591 = vmatpush1.msra.mxu0 0.0
    %592 = vmatprep.subr.mxu0 0.0
    %593 = vmatpush1.msra.mxu0 0.0
    %594 = vmatprep.subr.mxu0 0.0
    %595 = vmatpush1.msra.mxu0 0.0
    %596 = vmatprep.subr.mxu0 0.0
    %597 = vmatpush1.msra.mxu0 0.0
    %598 = vmatprep.subr.mxu0 0.0
    %599 = vmatpush1.msra.mxu0 0.0
    %600 = vmatprep.subr.mxu0 0.0
    %601 = vmatpush1.msra.mxu0 0.0
    %602 = vmatprep.subr.mxu0 0.0
    %603 = vmatpush1.msra.mxu0 0.0
    %604 = vmatprep.subr.mxu0 0.0
    %605 = vmatpush1.msra.mxu0 0.0
    %606 = vmatprep.subr.mxu0 0.0
    %607 = vmatpush1.msra.mxu0 0.0
    %608 = vmatprep.subr.mxu0 0.0
    %609 = vmatpush1.msra.mxu0 0.0
    %610 = vmatprep.subr.mxu0 0.0
    %611 = vmatpush1.msra.mxu0 0.0
    %612 = vmatprep.subr.mxu0 0.0
    %613 = vmatpush1.msra.mxu0 0.0
    %614 = vmatprep.subr.mxu0 0.0
    %615 = vmatpush1.msra.mxu0 0.0
    %616 = vmatprep.subr.mxu0 0.0
    %617 = vmatpush1.msra.mxu0 0.0
    %618 = vmatprep.subr.mxu0 0.0
    %619 = vmatpush1.msra.mxu0 0.0
    %620 = vmatprep.subr.mxu0 0.0
    %621 = vmatpush1.msra.mxu0 0.0
    %622 = vmatprep.subr.mxu0 0.0
    %623 = vmatpush1.msra.mxu0 0.0
    %624 = vmatprep.subr.mxu0 0.0
    %625 = vmatpush1.msra.mxu0 0.0
    %626 = vmatprep.subr.mxu0 0.0
    %627 = vmatpush1.msra.mxu0 0.0
    %628 = vmatprep.subr.mxu0 0.0
    %629 = vmatpush1.msra.mxu0 0.0
    %630 = vmatprep.subr.mxu0 0.0
    %631 = vmatpush1.msra.mxu0 0.0
    %632 = vmatprep.subr.mxu0 0.0
    %633 = vmatpush1.msra.mxu0 0.0
    %634 = vmatprep.mubr.f32.mxu0 0.0
    %635 = vmatmul.mubr.f32.gmra.mrb[0].mxu0 %v568
    %v636 = vpop.f32.mrb[0].mxu0
    %v637 = vadd.f32 %v565, %v636
    %v638 = vpop.f32.mrb[0].mxu0
    %639 = vdwg.mxu0
    %v640 = vmax.f32 %v637, 0.0
    %v641 = vld [vmem:[%s31] sm:$0xff]
    %v642 = vld [vmem:[%s31 + $0x8] sm:$0xff]
    %v643 = vld [vmem:[%s31 + $0x10] sm:$0xff]
    %v644 = vld [vmem:[%s31 + $0x18] sm:$0xff]
    %v645 = vld [vmem:[%s31 + $0x20] sm:$0xff]
    %v646 = vld [vmem:[%s31 + $0x28] sm:$0xff]
    %v647 = vld [vmem:[%s31 + $0x30] sm:$0xff]
    %v648 = vld [vmem:[%s31 + $0x38] sm:$0xff]
    %v649 = vld [vmem:[%s31 + $0x40] sm:$0xff]
    %v650 = vld [vmem:[%s31 + $0x48] sm:$0xff]
    %v651 = vld [vmem:[%s31 + $0x50] sm:$0xff]
    %v652 = vld [vmem:[%s31 + $0x58] sm:$0xff]
    %v653 = vld [vmem:[%s33] sm:$0x1]
    %v655 = vlaneseq
    %v656 = vshrl.u32 %v655, 7
    %v657 = vsub.s32 0, %v656
    %v658 = vrot.slane %v653, %v657
    %vm660 = vcmask 785408
    %v662 = vsel %vm660, %v640, 0
    %664 = vmatprep.subr.mxu0 0.0
    %665 = vmatpush1.msra.mxu0 %v641
    %666 = vmatprep.subr.mxu0 0.0
    %667 = vmatpush1.msra.mxu0 %v642
    %668 = vmatprep.subr.mxu0 0.0
    %669 = vmatpush1.msra.mxu0 %v643
    %670 = vmatprep.subr.mxu0 0.0
    %671 = vmatpush1.msra.mxu0 %v644
    %672 = vmatprep.subr.mxu0 0.0
    %673 = vmatpush1.msra.mxu0 %v645
    %674 = vmatprep.subr.mxu0 0.0
    %675 = vmatpush1.msra.mxu0 %v646
    %676 = vmatprep.subr.mxu0 0.0
    %677 = vmatpush1.msra.mxu0 %v647
    %678 = vmatprep.subr.mxu0 0.0
    %679 = vmatpush1.msra.mxu0 %v648
    %680 = vmatprep.subr.mxu0 0.0
    %681 = vmatpush1.msra.mxu0 %v649
    %682 = vmatprep.subr.mxu0 0.0
    %683 = vmatpush1.msra.mxu0 %v650
    %684 = vmatprep.subr.mxu0 0.0
    %685 = vmatpush1.msra.mxu0 %v651
    %686 = vmatprep.subr.mxu0 0.0
    %687 = vmatpush1.msra.mxu0 %v652
    %688 = vmatprep.subr.mxu0 0.0
    %689 = vmatpush1.msra.mxu0 0.0
    %690 = vmatprep.subr.mxu0 0.0
    %691 = vmatpush1.msra.mxu0 0.0
    %692 = vmatprep.subr.mxu0 0.0
    %693 = vmatpush1.msra.mxu0 0.0
    %694 = vmatprep.subr.mxu0 0.0
    %695 = vmatpush1.msra.mxu0 0.0
    %696 = vmatprep.subr.mxu0 0.0
    %697 = vmatpush1.msra.mxu0 0.0
    %698 = vmatprep.subr.mxu0 0.0
    %699 = vmatpush1.msra.mxu0 0.0
    %700 = vmatprep.subr.mxu0 0.0
    %701 = vmatpush1.msra.mxu0 0.0
    %702 = vmatprep.subr.mxu0 0.0
    %703 = vmatpush1.msra.mxu0 0.0
    %704 = vmatprep.subr.mxu0 0.0
    %705 = vmatpush1.msra.mxu0 0.0
    %706 = vmatprep.subr.mxu0 0.0
    %707 = vmatpush1.msra.mxu0 0.0
    %708 = vmatprep.subr.mxu0 0.0
    %709 = vmatpush1.msra.mxu0 0.0
    %710 = vmatprep.subr.mxu0 0.0
    %711 = vmatpush1.msra.mxu0 0.0
    %712 = vmatprep.subr.mxu0 0.0
    %713 = vmatpush1.msra.mxu0 0.0
    %714 = vmatprep.subr.mxu0 0.0
    %715 = vmatpush1.msra.mxu0 0.0
    %716 = vmatprep.subr.mxu0 0.0
    %717 = vmatpush1.msra.mxu0 0.0
    %718 = vmatprep.subr.mxu0 0.0
    %719 = vmatpush1.msra.mxu0 0.0
    %720 = vmatprep.subr.mxu0 0.0
    %721 = vmatpush1.msra.mxu0 0.0
    %722 = vmatprep.subr.mxu0 0.0
    %723 = vmatpush1.msra.mxu0 0.0
    %724 = vmatprep.subr.mxu0 0.0
    %725 = vmatpush1.msra.mxu0 0.0
    %726 = vmatprep.subr.mxu0 0.0
    %727 = vmatpush1.msra.mxu0 0.0
    %728 = vmatprep.mubr.f32.mxu0 0.0
    %729 = vmatmul.mubr.f32.gmra.mrb[0].mxu0 %v662
    %v730 = vpop.f32.mrb[0].mxu0
    %v731 = vadd.f32 %v658, %v730
    %v732 = vpop.f32.mrb[0].mxu0
    %733 = vdwg.mxu0
    %v734 = vadd.f32 %v553, %v731
    %735 = vst.msk [vmem:[#allocation2] sm:$0xff] %vm525, %v734
    %736 = vrot.lane.b32.xlu0 %v145, 48
    %v737 = vpop.permute.xlu0 %736
    %vm739 = vcmask 458112
    %740 = vst.msk [vmem:[#allocation2] sm:$0xff] %vm739, %v737
    %741 = vrot.lane.b32.xlu0 %v146, 56
    %v742 = vpop.permute.xlu0 %741
    %vm744 = vcmask 523712
    %745 = vst.msk [vmem:[#allocation2] sm:$0xff] %vm744, %v742
    %v746 = vld [vmem:[#allocation2] sm:$0xff]
    %v747 = vld [vmem:[%s35] sm:$0x1]
    %v748 = vld [vmem:[%s37] sm:$0x1]
    %v749 = vsel %vm436, %v746, 0.0
    %750 = vadd.xlane.f32.xlu0 %v749
    %v751 = vpop.xlane.xlu0 %750
    %v752 = vrcp.pop 64.0
    %v753 = vmul.f32 %v751, %v752
    %v754 = vsub.f32 %v746, %v753
    %v755 = vmul.f32 %v754, %v754
    %v756 = vsel %vm436, %v755, 0.0
    %757 = vadd.xlane.f32.xlu0 %v756
    %v758 = vpop.xlane.xlu0 %757
    %v759 = vmul.f32 %v758, %v752
    %v760 = vadd.f32 %v759, 1e-05
    %v761 = vrsqrt.pop %v760
    %v762 = vmul.f32 %v754, %v761
    %v764 = vlaneseq
    %v765 = vshrl.u32 %v764, 7
    %v766 = vsub.s32 0, %v765
    %v767 = vrot.slane %v747, %v766
    %v769 = vmul.f32 %v762, %v767
    %v771 = vlaneseq
    %v772 = vshrl.u32 %v771, 7
    %v773 = vsub.s32 0, %v772
    %v774 = vrot.slane %v748, %v773
    %v776 = vadd.f32 %v769, %v774
    %v777 = vld [vmem:[%s39] sm:$0xff]
    %v778 = vld [vmem:[%s39 + $0x8] sm:$0xff]
    %v779 = vld [vmem:[%s39 + $0x10] sm:$0xff]
    %v780 = vld [vmem:[%s39 + $0x18] sm:$0xff]
    %v781 = vld [vmem:[%s39 + $0x20] sm:$0xff]
    %v782 = vld [vmem:[%s39 + $0x28] sm:$0xff]
    %v783 = vld [vmem:[%s39 + $0x30] sm:$0xff]
    %v784 = vld [vmem:[%s39 + $0x38] sm:$0xff]
    %v785 = vld [vmem:[%s39 + $0x40] sm:$0xff]
    %v786 = vld [vmem:[%s39 + $0x48] sm:$0xff]
    %v787 = vld [vmem:[%s39 + $0x50] sm:$0xff]
    %v788 = vld [vmem:[%s39 + $0x58] sm:$0xff]
    %v789 = vld [vmem:[%s39 + $0x60] sm:$0xff]
    %v790 = vld [vmem:[%s39 + $0x68] sm:$0xff]
    %v791 = vld [vmem:[%s39 + $0x70] sm:$0xff]
    %v792 = vld [vmem:[%s39 + $0x78] sm:$0xff]
    %v793 = vld [vmem:[%s39 + $0x80] sm:$0xff]
    %v794 = vld [vmem:[%s39 + $0x88] sm:$0xff]
    %v795 = vld [vmem:[%s39 + $0x90] sm:$0xff]
    %v796 = vld [vmem:[%s39 + $0x98] sm:$0xff]
    %v797 = vld [vmem:[%s39 + $0xa0] sm:$0xff]
    %v798 = vld [vmem:[%s39 + $0xa8] sm:$0xff]
    %v799 = vld [vmem:[%s39 + $0xb0] sm:$0xff]
    %v800 = vld [vmem:[%s39 + $0xb8] sm:$0xff]
    %v801 = vld [vmem:[%s41] sm:$0x7]
    %v803 = vlaneseq
    %v804 = vshrl.u32 %v803, 7
    %v805 = vsub.s32 0, %v804
    %v806 = vrot.slane %v801, %v805
    %v807 = vlaneseq
    %v808 = vshrl.u32 %v807, 7
    %v809 = vsub.s32 1, %v808
    %v810 = vrot.slane %v801, %v809
    %v811 = vlaneseq
    %v812 = vshrl.u32 %v811, 7
    %v813 = vsub.s32 2, %v812
    %v814 = vrot.slane %v801, %v813
    %v819 = vsel %vm436, %v776, 0
    %821 = vmatprep.subr.mxu0 %v778
    %822 = vmatpush1.msra.mxu0 %v777
    %823 = vmatprep.subr.mxu0 %v781
    %824 = vmatpush1.msra.mxu0 %v780
    %825 = vmatprep.subr.mxu0 %v784
    %826 = vmatpush1.msra.mxu0 %v783
    %827 = vmatprep.subr.mxu0 %v787
    %828 = vmatpush1.msra.mxu0 %v786
    %829 = vmatprep.subr.mxu0 %v790
    %830 = vmatpush1.msra.mxu0 %v789
    %831 = vmatprep.subr.mxu0 %v793
    %832 = vmatpush1.msra.mxu0 %v792
    %833 = vmatprep.subr.mxu0 %v796
    %834 = vmatpush1.msra.mxu0 %v795
    %835 = vmatprep.subr.mxu0 %v799
    %836 = vmatpush1.msra.mxu0 %v798
    %837 = vmatprep.subr.mxu0 0.0
    %838 = vmatpush1.msra.mxu0 0.0
    %839 = vmatprep.subr.mxu0 0.0
    %840 = vmatpush1.msra.mxu0 0.0
    %841 = vmatprep.subr.mxu0 0.0
    %842 = vmatpush1.msra.mxu0 0.0
    %843 = vmatprep.subr.mxu0 0.0
    %844 = vmatpush1.msra.mxu0 0.0
    %845 = vmatprep.subr.mxu0 0.0
    %846 = vmatpush1.msra.mxu0 0.0
    %847 = vmatprep.subr.mxu0 0.0
    %848 = vmatpush1.msra.mxu0 0.0
    %849 = vmatprep.subr.mxu0 0.0
    %850 = vmatpush1.msra.mxu0 0.0
    %851 = vmatprep.subr.mxu0 0.0
    %852 = vmatpush1.msra.mxu0 0.0
    %853 = vmatprep.subr.mxu0 0.0
    %854 = vmatpush1.msra.mxu0 0.0
    %855 = vmatprep.subr.mxu0 0.0
    %856 = vmatpush1.msra.mxu0 0.0
    %857 = vmatprep.subr.mxu0 0.0
    %858 = vmatpush1.msra.mxu0 0.0
    %859 = vmatprep.subr.mxu0 0.0
    %860 = vmatpush1.msra.mxu0 0.0
    %861 = vmatprep.subr.mxu0 0.0
    %862 = vmatpush1.msra.mxu0 0.0
    %863 = vmatprep.subr.mxu0 0.0
    %864 = vmatpush1.msra.mxu0 0.0
    %865 = vmatprep.subr.mxu0 0.0
    %866 = vmatpush1.msra.mxu0 0.0
    %867 = vmatprep.subr.mxu0 0.0
    %868 = vmatpush1.msra.mxu0 0.0
    %869 = vmatprep.subr.mxu0 0.0
    %870 = vmatpush1.msra.mxu0 0.0
    %871 = vmatprep.subr.mxu0 0.0
    %872 = vmatpush1.msra.mxu0 0.0
    %873 = vmatprep.subr.mxu0 0.0
    %874 = vmatpush1.msra.mxu0 0.0
    %875 = vmatprep.subr.mxu0 0.0
    %876 = vmatpush1.msra.mxu0 0.0
    %877 = vmatprep.subr.mxu0 0.0
    %878 = vmatpush1.msra.mxu0 0.0
    %879 = vmatprep.subr.mxu0 0.0
    %880 = vmatpush1.msra.mxu0 0.0
    %881 = vmatprep.subr.mxu0 0.0
    %882 = vmatpush1.msra.mxu0 0.0
    %883 = vmatprep.subr.mxu0 0.0
    %884 = vmatpush1.msra.mxu0 0.0
    %885 = vmatprep.mubr.f32.mxu0 0.0
    %886 = vmatmul.mubr.f32.gmra.mrb[0].mxu0 %v819
    %v887 = vpop.f32.mrb[0].mxu0
    %v888 = vadd.f32 %v806, %v887
    %v889 = vpop.f32.mrb[0].mxu0
    %v890 = vadd.f32 %v810, %v889
    %891 = vdwg.mxu0
    %892 = vmatprep.subr.mxu0 0.0
    %893 = vmatpush1.msra.mxu0 %v779
    %894 = vmatprep.subr.mxu0 0.0
    %895 = vmatpush1.msra.mxu0 %v782
    %896 = vmatprep.subr.mxu0 0.0
    %897 = vmatpush1.msra.mxu0 %v785
    %898 = vmatprep.subr.mxu0 0.0
    %899 = vmatpush1.msra.mxu0 %v788
    %900 = vmatprep.subr.mxu0 0.0
    %901 = vmatpush1.msra.mxu0 %v791
    %902 = vmatprep.subr.mxu0 0.0
    %903 = vmatpush1.msra.mxu0 %v794
    %904 = vmatprep.subr.mxu0 0.0
    %905 = vmatpush1.msra.mxu0 %v797
    %906 = vmatprep.subr.mxu0 0.0
    %907 = vmatpush1.msra.mxu0 %v800
    %908 = vmatprep.subr.mxu0 0.0
    %909 = vmatpush1.msra.mxu0 0.0
    %910 = vmatprep.subr.mxu0 0.0
    %911 = vmatpush1.msra.mxu0 0.0
    %912 = vmatprep.subr.mxu0 0.0
    %913 = vmatpush1.msra.mxu0 0.0
    %914 = vmatprep.subr.mxu0 0.0
    %915 = vmatpush1.msra.mxu0 0.0
    %916 = vmatprep.subr.mxu0 0.0
    %917 = vmatpush1.msra.mxu0 0.0
    %918 = vmatprep.subr.mxu0 0.0
    %919 = vmatpush1.msra.mxu0 0.0
    %920 = vmatprep.subr.mxu0 0.0
    %921 = vmatpush1.msra.mxu0 0.0
    %922 = vmatprep.subr.mxu0 0.0
    %923 = vmatpush1.msra.mxu0 0.0
    %924 = vmatprep.subr.mxu0 0.0
    %925 = vmatpush1.msra.mxu0 0.0
    %926 = vmatprep.subr.mxu0 0.0
    %927 = vmatpush1.msra.mxu0 0.0
    %928 = vmatprep.subr.mxu0 0.0
    %929 = vmatpush1.msra.mxu0 0.0
    %930 = vmatprep.subr.mxu0 0.0
    %931 = vmatpush1.msra.mxu0 0.0
    %932 = vmatprep.subr.mxu0 0.0
    %933 = vmatpush1.msra.mxu0 0.0
    %934 = vmatprep.subr.mxu0 0.0
    %935 = vmatpush1.msra.mxu0 0.0
    %936 = vmatprep.subr.mxu0 0.0
    %937 = vmatpush1.msra.mxu0 0.0
    %938 = vmatprep.subr.mxu0 0.0
    %939 = vmatpush1.msra.mxu0 0.0
    %940 = vmatprep.subr.mxu0 0.0
    %941 = vmatpush1.msra.mxu0 0.0
    %942 = vmatprep.subr.mxu0 0.0
    %943 = vmatpush1.msra.mxu0 0.0
    %944 = vmatprep.subr.mxu0 0.0
    %945 = vmatpush1.msra.mxu0 0.0
    %946 = vmatprep.subr.mxu0 0.0
    %947 = vmatpush1.msra.mxu0 0.0
    %948 = vmatprep.subr.mxu0 0.0
    %949 = vmatpush1.msra.mxu0 0.0
    %950 = vmatprep.subr.mxu0 0.0
    %951 = vmatpush1.msra.mxu0 0.0
    %952 = vmatprep.subr.mxu0 0.0
    %953 = vmatpush1.msra.mxu0 0.0
    %954 = vmatprep.subr.mxu0 0.0
    %955 = vmatpush1.msra.mxu0 0.0
    %956 = vmatprep.mubr.f32.mxu0 0.0
    %957 = vmatmul.mubr.f32.gmra.mrb[0].mxu0 %v819
    %v958 = vpop.f32.mrb[0].mxu0
    %v959 = vadd.f32 %v814, %v958
    %v960 = vpop.f32.mrb[0].mxu0
    %961 = vdwg.mxu0
    %v962 = vmax.f32 %v888, 0.0
    %v963 = vmax.f32 %v890, 0.0
    %v964 = vmax.f32 %v959, 0.0
    %v965 = vld [vmem:[%s43] sm:$0xff]
    %v966 = vld [vmem:[%s43 + $0x8] sm:$0xff]
    %v967 = vld [vmem:[%s43 + $0x10] sm:$0xff]
    %v968 = vld [vmem:[%s43 + $0x18] sm:$0xff]
    %v969 = vld [vmem:[%s43 + $0x20] sm:$0xff]
    %v970 = vld [vmem:[%s43 + $0x28] sm:$0xff]
    %v971 = vld [vmem:[%s43 + $0x30] sm:$0xff]
    %v972 = vld [vmem:[%s43 + $0x38] sm:$0xff]
    %v973 = vld [vmem:[%s43 + $0x40] sm:$0xff]
    %v974 = vld [vmem:[%s43 + $0x48] sm:$0xff]
    %v975 = vld [vmem:[%s43 + $0x50] sm:$0xff]
    %v976 = vld [vmem:[%s43 + $0x58] sm:$0xff]
    %v977 = vld [vmem:[%s43 + $0x60] sm:$0xff]
    %v978 = vld [vmem:[%s43 + $0x68] sm:$0xff]
    %v979 = vld [vmem:[%s43 + $0x70] sm:$0xff]
    %v980 = vld [vmem:[%s43 + $0x78] sm:$0xff]
    %v981 = vld [vmem:[%s43 + $0x80] sm:$0xff]
    %v982 = vld [vmem:[%s43 + $0x88] sm:$0xff]
    %v983 = vld [vmem:[%s43 + $0x90] sm:$0xff]
    %v984 = vld [vmem:[%s43 + $0x98] sm:$0xff]
    %v985 = vld [vmem:[%s43 + $0xa0] sm:$0xff]
    %v986 = vld [vmem:[%s43 + $0xa8] sm:$0xff]
    %v987 = vld [vmem:[%s43 + $0xb0] sm:$0xff]
    %v988 = vld [vmem:[%s43 + $0xb8] sm:$0xff]
    %v989 = vld [vmem:[%s43 + $0xc0] sm:$0xff]
    %v990 = vld [vmem:[%s43 + $0xc8] sm:$0xff]
    %v991 = vld [vmem:[%s43 + $0xd0] sm:$0xff]
    %v992 = vld [vmem:[%s43 + $0xd8] sm:$0xff]
    %v993 = vld [vmem:[%s43 + $0xe0] sm:$0xff]
    %v994 = vld [vmem:[%s43 + $0xe8] sm:$0xff]
    %v995 = vld [vmem:[%s43 + $0xf0] sm:$0xff]
    %v996 = vld [vmem:[%s43 + $0xf8] sm:$0xff]
    %v997 = vld [vmem:[%s43 + $0x100] sm:$0xff]
    %v998 = vld [vmem:[%s43 + $0x108] sm:$0xff]
    %v999 = vld [vmem:[%s43 + $0x110] sm:$0xff]
    %v1000 = vld [vmem:[%s43 + $0x118] sm:$0xff]
    %v1001 = vld [vmem:[%s43 + $0x120] sm:$0xff]
    %v1002 = vld [vmem:[%s43 + $0x128] sm:$0xff]
    %v1003 = vld [vmem:[%s43 + $0x130] sm:$0xff]
    %v1004 = vld [vmem:[%s43 + $0x138] sm:$0xff]
    %v1005 = vld [vmem:[%s43 + $0x140] sm:$0xff]
    %v1006 = vld [vmem:[%s43 + $0x148] sm:$0xff]
    %v1007 = vld [vmem:[%s43 + $0x150] sm:$0xff]
    %v1008 = vld [vmem:[%s43 + $0x158] sm:$0xff]
    %v1009 = vld [vmem:[%s43 + $0x160] sm:$0xff]
    %v1010 = vld [vmem:[%s43 + $0x168] sm:$0xff]
    %v1011 = vld [vmem:[%s43 + $0x170] sm:$0xff]
    %v1012 = vld [vmem:[%s43 + $0x178] sm:$0xff]
    %v1013 = vld [vmem:[%s45] sm:$0x1]
    %v1015 = vlaneseq
    %v1016 = vshrl.u32 %v1015, 7
    %v1017 = vsub.s32 0, %v1016
    %v1018 = vrot.slane %v1013, %v1017
    %1020 = vmatprep.subr.mxu0 0.0
    %1021 = vmatpush1.msra.mxu0 %v965
    %1022 = vmatprep.subr.mxu0 0.0
    %1023 = vmatpush1.msra.mxu0 %v966
    %1024 = vmatprep.subr.mxu0 0.0
    %1025 = vmatpush1.msra.mxu0 %v967
    %1026 = vmatprep.subr.mxu0 0.0
    %1027 = vmatpush1.msra.mxu0 %v968
    %1028 = vmatprep.subr.mxu0 0.0
    %1029 = vmatpush1.msra.mxu0 %v969
    %1030 = vmatprep.subr.mxu0 0.0
    %1031 = vmatpush1.msra.mxu0 %v970
    %1032 = vmatprep.subr.mxu0 0.0
    %1033 = vmatpush1.msra.mxu0 %v971
    %1034 = vmatprep.subr.mxu0 0.0
    %1035 = vmatpush1.msra.mxu0 %v972
    %1036 = vmatprep.subr.mxu0 0.0
    %1037 = vmatpush1.msra.mxu0 %v973
    %1038 = vmatprep.subr.mxu0 0.0
    %1039 = vmatpush1.msra.mxu0 %v974
    %1040 = vmatprep.subr.mxu0 0.0
    %1041 = vmatpush1.msra.mxu0 %v975
    %1042 = vmatprep.subr.mxu0 0.0
    %1043 = vmatpush1.msra.mxu0 %v976
    %1044 = vmatprep.subr.mxu0 0.0
    %1045 = vmatpush1.msra.mxu0 %v977
    %1046 = vmatprep.subr.mxu0 0.0
    %1047 = vmatpush1.msra.mxu0 %v978
    %1048 = vmatprep.subr.mxu0 0.0
    %1049 = vmatpush1.msra.mxu0 %v979
    %1050 = vmatprep.subr.mxu0 0.0
    %1051 = vmatpush1.msra.mxu0 %v980
    %1052 = vmatprep.subr.mxu0 0.0
    %1053 = vmatpush1.msra.mxu0 %v981
    %1054 = vmatprep.subr.mxu0 0.0
    %1055 = vmatpush1.msra.mxu0 %v982
    %1056 = vmatprep.subr.mxu0 0.0
    %1057 = vmatpush1.msra.mxu0 %v983
    %1058 = vmatprep.subr.mxu0 0.0
    %1059 = vmatpush1.msra.mxu0 %v984
    %1060 = vmatprep.subr.mxu0 0.0
    %1061 = vmatpush1.msra.mxu0 %v985
    %1062 = vmatprep.subr.mxu0 0.0
    %1063 = vmatpush1.msra.mxu0 %v986
    %1064 = vmatprep.subr.mxu0 0.0
    %1065 = vmatpush1.msra.mxu0 %v987
    %1066 = vmatprep.subr.mxu0 0.0
    %1067 = vmatpush1.msra.mxu0 %v988
    %1068 = vmatprep.subr.mxu0 0.0
    %1069 = vmatpush1.msra.mxu0 %v989
    %1070 = vmatprep.subr.mxu0 0.0
    %1071 = vmatpush1.msra.mxu0 %v990
    %1072 = vmatprep.subr.mxu0 0.0
    %1073 = vmatpush1.msra.mxu0 %v991
    %1074 = vmatprep.subr.mxu0 0.0
    %1075 = vmatpush1.msra.mxu0 %v992
    %1076 = vmatprep.subr.mxu0 0.0
    %1077 = vmatpush1.msra.mxu0 %v993
    %1078 = vmatprep.subr.mxu0 0.0
    %1079 = vmatpush1.msra.mxu0 %v994
    %1080 = vmatprep.subr.mxu0 0.0
    %1081 = vmatpush1.msra.mxu0 %v995
    %1082 = vmatprep.subr.mxu0 0.0
    %1083 = vmatpush1.msra.mxu0 %v996
    %1084 = vmatprep.mubr.f32.mxu0 %v963
    %1085 = vmatmul.mubr.f32.gmra.mrb[0].mxu0 %v962
    %v1086 = vpop.f32.mrb[0].mxu0
    %v1087 = vadd.f32 %v1018, %v1086
    %v1088 = vpop.f32.mrb[0].mxu0
    %1089 = vdwg.mxu0
    %1090 = vmatprep.subr.mxu0 0.0
    %1091 = vmatpush1.msra.mxu0 %v997
    %1092 = vmatprep.subr.mxu0 0.0
    %1093 = vmatpush1.msra.mxu0 %v998
    %1094 = vmatprep.subr.mxu0 0.0
    %1095 = vmatpush1.msra.mxu0 %v999
    %1096 = vmatprep.subr.mxu0 0.0
    %1097 = vmatpush1.msra.mxu0 %v1000
    %1098 = vmatprep.subr.mxu0 0.0
    %1099 = vmatpush1.msra.mxu0 %v1001
    %1100 = vmatprep.subr.mxu0 0.0
    %1101 = vmatpush1.msra.mxu0 %v1002
    %1102 = vmatprep.subr.mxu0 0.0
    %1103 = vmatpush1.msra.mxu0 %v1003
    %1104 = vmatprep.subr.mxu0 0.0
    %1105 = vmatpush1.msra.mxu0 %v1004
    %1106 = vmatprep.subr.mxu0 0.0
    %1107 = vmatpush1.msra.mxu0 %v1005
    %1108 = vmatprep.subr.mxu0 0.0
    %1109 = vmatpush1.msra.mxu0 %v1006
    %1110 = vmatprep.subr.mxu0 0.0
    %1111 = vmatpush1.msra.mxu0 %v1007
    %1112 = vmatprep.subr.mxu0 0.0
    %1113 = vmatpush1.msra.mxu0 %v1008
    %1114 = vmatprep.subr.mxu0 0.0
    %1115 = vmatpush1.msra.mxu0 %v1009
    %1116 = vmatprep.subr.mxu0 0.0
    %1117 = vmatpush1.msra.mxu0 %v1010
    %1118 = vmatprep.subr.mxu0 0.0
    %1119 = vmatpush1.msra.mxu0 %v1011
    %1120 = vmatprep.subr.mxu0 0.0
    %1121 = vmatpush1.msra.mxu0 %v1012
    %1122 = vmatprep.subr.mxu0 0.0
    %1123 = vmatpush1.msra.mxu0 0.0
    %1124 = vmatprep.subr.mxu0 0.0
    %1125 = vmatpush1.msra.mxu0 0.0
    %1126 = vmatprep.subr.mxu0 0.0
    %1127 = vmatpush1.msra.mxu0 0.0
    %1128 = vmatprep.subr.mxu0 0.0
    %1129 = vmatpush1.msra.mxu0 0.0
    %1130 = vmatprep.subr.mxu0 0.0
    %1131 = vmatpush1.msra.mxu0 0.0
    %1132 = vmatprep.subr.mxu0 0.0
    %1133 = vmatpush1.msra.mxu0 0.0
    %1134 = vmatprep.subr.mxu0 0.0
    %1135 = vmatpush1.msra.mxu0 0.0
    %1136 = vmatprep.subr.mxu0 0.0
    %1137 = vmatpush1.msra.mxu0 0.0
    %1138 = vmatprep.subr.mxu0 0.0
    %1139 = vmatpush1.msra.mxu0 0.0
    %1140 = vmatprep.subr.mxu0 0.0
    %1141 = vmatpush1.msra.mxu0 0.0
    %1142 = vmatprep.subr.mxu0 0.0
    %1143 = vmatpush1.msra.mxu0 0.0
    %1144 = vmatprep.subr.mxu0 0.0
    %1145 = vmatpush1.msra.mxu0 0.0
    %1146 = vmatprep.subr.mxu0 0.0
    %1147 = vmatpush1.msra.mxu0 0.0
    %1148 = vmatprep.subr.mxu0 0.0
    %1149 = vmatpush1.msra.mxu0 0.0
    %1150 = vmatprep.subr.mxu0 0.0
    %1151 = vmatpush1.msra.mxu0 0.0
    %1152 = vmatprep.subr.mxu0 0.0
    %1153 = vmatpush1.msra.mxu0 0.0
    %1154 = vmatprep.mubr.f32.mxu0 0.0
    %1155 = vmatmul.mubr.f32.gmra.mrb[0].mxu0 %v964
    %v1156 = vpop.f32.mrb[0].mxu0
    %v1157 = vadd.f32 %v1087, %v1156
    %v1158 = vpop.f32.mrb[0].mxu0
    %1159 = vdwg.mxu0
    %v1160 = vld [vmem:[%s47] sm:$0xff]
    %v1161 = vld [vmem:[%s47 + $0x8] sm:$0xff]
    %v1162 = vld [vmem:[%s47 + $0x10] sm:$0xff]
    %v1163 = vld [vmem:[%s47 + $0x18] sm:$0xff]
    %v1164 = vld [vmem:[%s47 + $0x20] sm:$0xff]
    %v1165 = vld [vmem:[%s47 + $0x28] sm:$0xff]
    %v1166 = vld [vmem:[%s47 + $0x30] sm:$0xff]
    %v1167 = vld [vmem:[%s47 + $0x38] sm:$0xff]
    %v1168 = vld [vmem:[%s49] sm:$0x1]
    %v1170 = vlaneseq
    %v1171 = vshrl.u32 %v1170, 7
    %v1172 = vsub.s32 0, %v1171
    %v1173 = vrot.slane %v1168, %v1172
    %1175 = vmatprep.subr.mxu0 0.0
    %1176 = vmatpush1.msra.mxu0 %v1160
    %1177 = vmatprep.subr.mxu0 0.0
    %1178 = vmatpush1.msra.mxu0 %v1161
    %1179 = vmatprep.subr.mxu0 0.0
    %1180 = vmatpush1.msra.mxu0 %v1162
    %1181 = vmatprep.subr.mxu0 0.0
    %1182 = vmatpush1.msra.mxu0 %v1163
    %1183 = vmatprep.subr.mxu0 0.0
    %1184 = vmatpush1.msra.mxu0 %v1164
    %1185 = vmatprep.subr.mxu0 0.0
    %1186 = vmatpush1.msra.mxu0 %v1165
    %1187 = vmatprep.subr.mxu0 0.0
    %1188 = vmatpush1.msra.mxu0 %v1166
    %1189 = vmatprep.subr.mxu0 0.0
    %1190 = vmatpush1.msra.mxu0 %v1167
    %1191 = vmatprep.subr.mxu0 0.0
    %1192 = vmatpush1.msra.mxu0 0.0
    %1193 = vmatprep.subr.mxu0 0.0
    %1194 = vmatpush1.msra.mxu0 0.0
    %1195 = vmatprep.subr.mxu0 0.0
    %1196 = vmatpush1.msra.mxu0 0.0
    %1197 = vmatprep.subr.mxu0 0.0
    %1198 = vmatpush1.msra.mxu0 0.0
    %1199 = vmatprep.subr.mxu0 0.0
    %1200 = vmatpush1.msra.mxu0 0.0
    %1201 = vmatprep.subr.mxu0 0.0
    %1202 = vmatpush1.msra.mxu0 0.0
    %1203 = vmatprep.subr.mxu0 0.0
    %1204 = vmatpush1.msra.mxu0 0.0
    %1205 = vmatprep.subr.mxu0 0.0
    %1206 = vmatpush1.msra.mxu0 0.0
    %1207 = vmatprep.subr.mxu0 0.0
    %1208 = vmatpush1.msra.mxu0 0.0
    %1209 = vmatprep.subr.mxu0 0.0
    %1210 = vmatpush1.msra.mxu0 0.0
    %1211 = vmatprep.subr.mxu0 0.0
    %1212 = vmatpush1.msra.mxu0 0.0
    %1213 = vmatprep.subr.mxu0 0.0
    %1214 = vmatpush1.msra.mxu0 0.0
    %1215 = vmatprep.subr.mxu0 0.0
    %1216 = vmatpush1.msra.mxu0 0.0
    %1217 = vmatprep.subr.mxu0 0.0
    %1218 = vmatpush1.msra.mxu0 0.0
    %1219 = vmatprep.subr.mxu0 0.0
    %1220 = vmatpush1.msra.mxu0 0.0
    %1221 = vmatprep.subr.mxu0 0.0
    %1222 = vmatpush1.msra.mxu0 0.0
    %1223 = vmatprep.subr.mxu0 0.0
    %1224 = vmatpush1.msra.mxu0 0.0
    %1225 = vmatprep.subr.mxu0 0.0
    %1226 = vmatpush1.msra.mxu0 0.0
    %1227 = vmatprep.subr.mxu0 0.0
    %1228 = vmatpush1.msra.mxu0 0.0
    %1229 = vmatprep.subr.mxu0 0.0
    %1230 = vmatpush1.msra.mxu0 0.0
    %1231 = vmatprep.subr.mxu0 0.0
    %1232 = vmatpush1.msra.mxu0 0.0
    %1233 = vmatprep.subr.mxu0 0.0
    %1234 = vmatpush1.msra.mxu0 0.0
    %1235 = vmatprep.subr.mxu0 0.0
    %1236 = vmatpush1.msra.mxu0 0.0
    %1237 = vmatprep.subr.mxu0 0.0
    %1238 = vmatpush1.msra.mxu0 0.0
    %1239 = vmatprep.mubr.f32.mxu0 0.0
    %1240 = vmatmul.mubr.f32.gmra.mrb[0].mxu0 %v819
    %v1241 = vpop.f32.mrb[0].mxu0
    %v1242 = vadd.f32 %v1173, %v1241
    %v1243 = vpop.f32.mrb[0].mxu0
    %1244 = vdwg.mxu0
    %v1245 = vadd.f32 %v1157, %v1242
    %vm1246 = vcmask 457728
    %1247 = vst.msk [vmem:[#allocation3] sm:$0xff] %vm1246, %v1245
    %v1248 = vld [vmem:[%s51] sm:$0xff]
    %v1249 = vld [vmem:[%s53] sm:$0x1]
    %v1251 = vlaneseq
    %v1252 = vshrl.u32 %v1251, 7
    %v1253 = vsub.s32 0, %v1252
    %v1254 = vrot.slane %v1249, %v1253
    %1256 = vmatprep.subr.mxu0 0.0
    %1257 = vmatpush1.msra.mxu0 %v1248
    %1258 = vmatprep.subr.mxu0 0.0
    %1259 = vmatpush1.msra.mxu0 0.0
    %1260 = vmatprep.subr.mxu0 0.0
    %1261 = vmatpush1.msra.mxu0 0.0
    %1262 = vmatprep.subr.mxu0 0.0
    %1263 = vmatpush1.msra.mxu0 0.0
    %1264 = vmatprep.subr.mxu0 0.0
    %1265 = vmatpush1.msra.mxu0 0.0
    %1266 = vmatprep.subr.mxu0 0.0
    %1267 = vmatpush1.msra.mxu0 0.0
    %1268 = vmatprep.subr.mxu0 0.0
    %1269 = vmatpush1.msra.mxu0 0.0
    %1270 = vmatprep.subr.mxu0 0.0
    %1271 = vmatpush1.msra.mxu0 0.0
    %1272 = vmatprep.subr.mxu0 0.0
    %1273 = vmatpush1.msra.mxu0 0.0
    %1274 = vmatprep.subr.mxu0 0.0
    %1275 = vmatpush1.msra.mxu0 0.0
    %1276 = vmatprep.subr.mxu0 0.0
    %1277 = vmatpush1.msra.mxu0 0.0
    %1278 = vmatprep.subr.mxu0 0.0
    %1279 = vmatpush1.msra.mxu0 0.0
    %1280 = vmatprep.subr.mxu0 0.0
    %1281 = vmatpush1.msra.mxu0 0.0
    %1282 = vmatprep.subr.mxu0 0.0
    %1283 = vmatpush1.msra.mxu0 0.0
    %1284 = vmatprep.subr.mxu0 0.0
    %1285 = vmatpush1.msra.mxu0 0.0
    %1286 = vmatprep.subr.mxu0 0.0
    %1287 = vmatpush1.msra.mxu0 0.0
    %1288 = vmatprep.subr.mxu0 0.0
    %1289 = vmatpush1.msra.mxu0 0.0
    %1290 = vmatprep.subr.mxu0 0.0
    %1291 = vmatpush1.msra.mxu0 0.0
    %1292 = vmatprep.subr.mxu0 0.0
    %1293 = vmatpush1.msra.mxu0 0.0
    %1294 = vmatprep.subr.mxu0 0.0
    %1295 = vmatpush1.msra.mxu0 0.0
    %1296 = vmatprep.subr.mxu0 0.0
    %1297 = vmatpush1.msra.mxu0 0.0
    %1298 = vmatprep.subr.mxu0 0.0
    %1299 = vmatpush1.msra.mxu0 0.0
    %1300 = vmatprep.subr.mxu0 0.0
    %1301 = vmatpush1.msra.mxu0 0.0
    %1302 = vmatprep.subr.mxu0 0.0
    %1303 = vmatpush1.msra.mxu0 0.0
    %1304 = vmatprep.subr.mxu0 0.0
    %1305 = vmatpush1.msra.mxu0 0.0
    %1306 = vmatprep.subr.mxu0 0.0
    %1307 = vmatpush1.msra.mxu0 0.0
    %1308 = vmatprep.subr.mxu0 0.0
    %1309 = vmatpush1.msra.mxu0 0.0
    %1310 = vmatprep.subr.mxu0 0.0
    %1311 = vmatpush1.msra.mxu0 0.0
    %1312 = vmatprep.subr.mxu0 0.0
    %1313 = vmatpush1.msra.mxu0 0.0
    %1314 = vmatprep.subr.mxu0 0.0
    %1315 = vmatpush1.msra.mxu0 0.0
    %1316 = vmatprep.subr.mxu0 0.0
    %1317 = vmatpush1.msra.mxu0 0.0
    %1318 = vmatprep.subr.mxu0 0.0
    %1319 = vmatpush1.msra.mxu0 0.0
    %1320 = vmatprep.mubr.f32.mxu0 0.0
    %1321 = vmatmul.mubr.f32.gmra.mrb[0].mxu0 %v151
    %v1322 = vpop.f32.mrb[0].mxu0
    %v1323 = vadd.f32 %v1254, %v1322
    %v1324 = vpop.f32.mrb[0].mxu0
    %1325 = vdwg.mxu0
    %1326 = vst.msk [vmem:[#allocation4] sm:$0xff] %vm1246, %v1323
    %v1327 = vld [vmem:[#allocation3] sm:$0xff]
    %v1328 = vld [vmem:[%s55] sm:$0x1]
    %v1329 = vld [vmem:[%s57] sm:$0x1]
    %vm1330 = vcmask 130048
    %v1331 = vsel %vm1330, %v1327, 0.0
    %1332 = vadd.xlane.f32.xlu0 %v1331
    %v1333 = vpop.xlane.xlu0 %1332
    %v1334 = vrcp.pop 16.0
    %v1335 = vmul.f32 %v1333, %v1334
    %v1336 = vsub.f32 %v1327, %v1335
    %v1337 = vmul.f32 %v1336, %v1336
    %v1338 = vsel %vm1330, %v1337, 0.0
    %1339 = vadd.xlane.f32.xlu0 %v1338
    %v1340 = vpop.xlane.xlu0 %1339
    %v1341 = vmul.f32 %v1340, %v1334
    %v1342 = vadd.f32 %v1341, 1e-05
    %v1343 = vrsqrt.pop %v1342
    %v1344 = vmul.f32 %v1336, %v1343
    %v1346 = vlaneseq
    %v1347 = vshrl.u32 %v1346, 7
    %v1348 = vsub.s32 0, %v1347
    %v1349 = vrot.slane %v1328, %v1348
    %v1351 = vmul.f32 %v1344, %v1349
    %v1353 = vlaneseq
    %v1354 = vshrl.u32 %v1353, 7
    %v1355 = vsub.s32 0, %v1354
    %v1356 = vrot.slane %v1329, %v1355
    %v1358 = vadd.f32 %v1351, %v1356
    %v1359 = vld [vmem:[#allocation4] sm:$0xff]
    %v1360 = vadd.f32 %v1358, %v1359
    %1361 = vst.msk [vmem:[#allocation5] sm:$0xff] %vm1330, %v1360
    %v1362 = vld [vmem:[#allocation3] sm:$0xff]
    %v1363 = vld [vmem:[%s59] sm:$0x1]
    %v1364 = vld [vmem:[%s61] sm:$0x1]
    %1366 = vrot.lane.b32.xlu0 %v1362, 112
    %v1367 = vpop.permute.xlu0 %1366
    %v1369 = vsel %vm306, %v1367, 0.0
    %1370 = vadd.xlane.f32.xlu0 %v1369
    %v1371 = vpop.xlane.xlu0 %1370
    %v1372 = vmul.f32 %v1371, %v310
    %v1373 = vsub.f32 %v1362, %v1372
    %v1374 = vmul.f32 %v1373, %v1373
    %1376 = vrot.lane.b32.xlu0 %v1374, 112
    %v1377 = vpop.permute.xlu0 %1376
    %v1379 = vsel %vm306, %v1377, 0.0
    %1380 = vadd.xlane.f32.xlu0 %v1379
    %v1381 = vpop.xlane.xlu0 %1380
    %v1382 = vmul.f32 %v1381, %v310
    %v1383 = vadd.f32 %v1382, 1e-05
    %v1384 = vrsqrt.pop %v1383
    %v1385 = vmul.f32 %v1373, %v1384
    %v1387 = vlaneseq
    %v1388 = vshrl.u32 %v1387, 7
    %v1389 = vsub.s32 0, %v1388
    %v1390 = vrot.slane %v1363, %v1389
    %1391 = vrot.lane.b32.xlu0 %v1390, 16
    %v1392 = vpop.permute.xlu0 %1391
    %v1394 = vmul.f32 %v1385, %v1392
    %v1396 = vlaneseq
    %v1397 = vshrl.u32 %v1396, 7
    %v1398 = vsub.s32 0, %v1397
    %v1399 = vrot.slane %v1364, %v1398
    %1400 = vrot.lane.b32.xlu0 %v1399, 16
    %v1401 = vpop.permute.xlu0 %1400
    %v1403 = vadd.f32 %v1394, %v1401
    %v1404 = vld [vmem:[#allocation4] sm:$0xff]
    %v1405 = vadd.f32 %v1403, %v1404
    %1407 = vrot.lane.b32.xlu0 %v1405, 112
    %v1408 = vpop.permute.xlu0 %1407
    %1410 = vst.msk [vmem:[#allocation7] sm:$0xff] %vm306, %v1408
    %v1411 = vld [vmem:[#allocation3] sm:$0xff]
    %v1412 = vld [vmem:[%s63] sm:$0x1]
    %v1413 = vld [vmem:[%s65] sm:$0x1]
    %1415 = vrot.lane.b32.xlu0 %v1411, 80
    %v1416 = vpop.permute.xlu0 %1415
    %v1418 = vsel %vm149, %v1416, 0.0
    %1419 = vadd.xlane.f32.xlu0 %v1418
    %v1420 = vpop.xlane.xlu0 %1419
    %v1421 = vrcp.pop 8.0
    %v1422 = vmul.f32 %v1420, %v1421
    %v1423 = vsub.f32 %v1411, %v1422
    %v1424 = vmul.f32 %v1423, %v1423
    %1426 = vrot.lane.b32.xlu0 %v1424, 80
    %v1427 = vpop.permute.xlu0 %1426
    %v1429 = vsel %vm149, %v1427, 0.0
    %1430 = vadd.xlane.f32.xlu0 %v1429
    %v1431 = vpop.xlane.xlu0 %1430
    %v1432 = vmul.f32 %v1431, %v1421
    %v1433 = vadd.f32 %v1432, 1e-05
    %v1434 = vrsqrt.pop %v1433
    %v1435 = vmul.f32 %v1423, %v1434
    %v1437 = vlaneseq
    %v1438 = vshrl.u32 %v1437, 7
    %v1439 = vsub.s32 0, %v1438
    %v1440 = vrot.slane %v1412, %v1439
    %1441 = vrot.lane.b32.xlu0 %v1440, 48
    %v1442 = vpop.permute.xlu0 %1441
    %v1444 = vmul.f32 %v1435, %v1442
    %v1446 = vlaneseq
    %v1447 = vshrl.u32 %v1446, 7
    %v1448 = vsub.s32 0, %v1447
    %v1449 = vrot.slane %v1413, %v1448
    %1450 = vrot.lane.b32.xlu0 %v1449, 48
    %v1451 = vpop.permute.xlu0 %1450
    %v1453 = vadd.f32 %v1444, %v1451
    %v1454 = vld [vmem:[#allocation4] sm:$0xff]
    %v1455 = vadd.f32 %v1453, %v1454
    %1457 = vrot.lane.b32.xlu0 %v1455, 80
    %v1458 = vpop.permute.xlu0 %1457
    %1460 = vst.msk [vmem:[#allocation9] sm:$0xff] %vm149, %v1458
    // Predicated region
    $region134: #{forward.1} parent=1 // pred_check
      _
    $region135: #{forward.1} parent=1 // pred_check_branch
      %1462 = sbr.rel (0) target = $region137
    $region136: #{forward.1} parent=1 // pred_region
      %s1464 = ssub.s32 128, 128
      %1465 = vsyncadd [#allocation6], %s1464
      %s1467 = sshll.u32 [#allocation5], 4
      %s1468 = int_to_ptr.vmem [resolvable:$true] %s1467
      %1470 = dma.vmem_to_hbm [thread:$0]  %s1468, 128, %s67, [#allocation6]
    $region137: #{forward.1} parent=1 // pred_fallthru
      _
    // Predicated region
    $region138: #{forward.1} parent=1 // pred_check
      _
    $region139: #{forward.1} parent=1 // pred_check_branch
      %1472 = sbr.rel (0) target = $region141
    $region140: #{forward.1} parent=1 // pred_region
      %s1474 = ssub.s32 128, 128
      %1475 = vsyncadd [#allocation8], %s1474
      %s1477 = sshll.u32 [#allocation7], 4
      %s1478 = int_to_ptr.vmem [resolvable:$true] %s1477
      %1480 = dma.vmem_to_hbm [thread:$0]  %s1478, 128, %s69, [#allocation8]
    $region141: #{forward.1} parent=1 // pred_fallthru
      _
    // Predicated region
    $region142: #{forward.1} parent=1 // pred_check
      _
    $region143: #{forward.1} parent=1 // pred_check_branch
      %1482 = sbr.rel (0) target = $region145
    $region144: #{forward.1} parent=1 // pred_region
      %s1484 = ssub.s32 128, 128
      %1485 = vsyncadd [#allocation8], %s1484
      %s1487 = sshll.u32 [#allocation9], 4
      %s1488 = int_to_ptr.vmem [resolvable:$true] %s1487
      %1490 = dma.vmem_to_hbm [thread:$0]  %s1488, 128, %s71, [#allocation8]
    $region145: #{forward.1} parent=1 // pred_fallthru
      _
    // Predicated region
    $region146: #{forward.1} parent=1 // pred_check
      _
    $region147: #{forward.1} parent=1 // pred_check_branch
      %1492 = sbr.rel (0) target = $region149
    $region148: #{forward.1} parent=1 // pred_region
      %1493 = dma.done [#allocation6], 128
    $region149: #{forward.1} parent=1 // pred_fallthru
      _
    // Predicated region
    $region150: #{forward.1} parent=1 // pred_check
      _
    $region151: #{forward.1} parent=1 // pred_check_branch
      %1495 = sbr.rel (0) target = $region153
    $region152: #{forward.1} parent=1 // pred_region
      %1496 = dma.done [#allocation8], 128
    $region153: #{forward.1} parent=1 // pred_fallthru
      _
    // Predicated region
    $region154: #{forward.1} parent=1 // pred_check
      _
    $region155: #{forward.1} parent=1 // pred_check_branch
      %1498 = sbr.rel (0) target = $region157
    $region156: #{forward.1} parent=1 // pred_region
      %1499 = dma.done [#allocation8], 128
    $region157: #{forward.1} parent=1 // pred_fallthru
      _
    %1500 = vsyncpa [#allocation6], 1
    %1501 = vsyncpa [#allocation8], 1

</llo_original>
